<compile_context>
chip_gen: v7x
topology: tpu7x:2x2x1
jax: 0.10.0
libtpu: 0.0.40
codegen_flags: <defaults>
</compile_context>

<pallas_src>
import functools

import jax
import jax.numpy as jnp
from jax.experimental import pallas as pl
from jax.experimental.pallas import tpu as pltpu


def mlp_kernel(x_ref, w1_ref, b1_ref, w2_ref, b2_ref, o_ref):
    # x_ref:(tm,K) bf16 | w1_ref:(K,Hp) bf16 | b1_ref:(1,Hp) f32
    # w2_ref:(Hp,Cp) bf16 | b2_ref:(1,Cp) f32 | o_ref:(tm,Cp) f32
    h = jnp.dot(x_ref[...], w1_ref[...], preferred_element_type=jnp.float32)
    h = jnp.maximum(h + b1_ref[...], 0.0)          # bias + ReLU in f32 (VPU)
    out = jnp.dot(h.astype(w2_ref.dtype), w2_ref[...],
                  preferred_element_type=jnp.float32) + b2_ref[...]
    o_ref[...] = out.astype(o_ref.dtype)


def _pad_axis(x, target, axis):
    pad = target - x.shape[axis]
    if pad == 0:
        return x
    widths = [(0, 0)] * x.ndim
    widths[axis] = (0, pad)
    return jnp.pad(x, widths)


@functools.partial(jax.jit, static_argnames=("tm",))
def net_forward(x, w1, b1, w2, b2, *, tm=128):
    """Full MLP forward. tm = batch rows per grid step (128 default; 256 is a
    good choice on v6e at large batch)."""
    B, K = x.shape
    H = w1.shape[1]            # 500
    C = w2.shape[1]            # 10

    H_pad = pl.cdiv(H, 128) * 128          # 500 -> 512
    C_pad = pl.cdiv(C, 128) * 128          # 10  -> 128 (lane-dense output)
    B_pad = pl.cdiv(B, tm) * tm

    # bf16 operands for the MXU (halves HBM weight bytes, 2x MXU throughput);
    # biases stay f32 and are added on the f32 accumulator path.
    x_p = _pad_axis(x.astype(jnp.bfloat16), B_pad, 0)
    w1_p = _pad_axis(w1.astype(jnp.bfloat16), H_pad, 1)
    b1_p = _pad_axis(b1.reshape(1, -1).astype(jnp.float32), H_pad, 1)
    w2_p = _pad_axis(_pad_axis(w2.astype(jnp.bfloat16), H_pad, 0), C_pad, 1)
    b2_p = _pad_axis(b2.reshape(1, -1).astype(jnp.float32), C_pad, 1)

    out_padded = pl.pallas_call(
        mlp_kernel,
        out_shape=jax.ShapeDtypeStruct((B_pad, C_pad), jnp.float32),
        grid_spec=pltpu.PrefetchScalarGridSpec(
            num_scalar_prefetch=0,
            grid=(B_pad // tm,),
            in_specs=[
                pl.BlockSpec((tm, K), lambda i: (i, 0)),         # x tile/step
                pl.BlockSpec((K, H_pad), lambda i: (0, 0)),      # w1 resident
                pl.BlockSpec((1, H_pad), lambda i: (0, 0)),      # b1 resident
                pl.BlockSpec((H_pad, C_pad), lambda i: (0, 0)),  # w2 resident
                pl.BlockSpec((1, C_pad), lambda i: (0, 0)),      # b2 resident
            ],
            out_specs=pl.BlockSpec((tm, C_pad), lambda i: (i, 0)),
        ),
        compiler_params=pltpu.CompilerParams(
            dimension_semantics=("parallel",)),   # v7x: shard batch over 2 TCs
    )(x_p, w1_p, b1_p, w2_p, b2_p)

    # Slice away batch + class padding outside the kernel.
    return out_padded[:B, :C].astype(x.dtype)


def init_params(key, input_size=784, hidden_size=500, num_classes=10,
                dtype=jnp.float32):
    """PyTorch-style Linear init: U(-1/sqrt(fan_in), 1/sqrt(fan_in))."""
    k1, k2, k3, k4 = jax.random.split(key, 4)
    bound1 = 1.0 / (input_size ** 0.5)
    bound2 = 1.0 / (hidden_size ** 0.5)
    # Stored as (in, out) — transpose of PyTorch's (out, in).
    w1 = jax.random.uniform(k1, (input_size, hidden_size), dtype,
                            minval=-bound1, maxval=bound1)
    b1 = jax.random.uniform(k2, (1, hidden_size), dtype,
                            minval=-bound1, maxval=bound1)
    w2 = jax.random.uniform(k3, (hidden_size, num_classes), dtype,
                            minval=-bound2, maxval=bound2)
    b2 = jax.random.uniform(k4, (1, num_classes), dtype,
                            minval=-bound2, maxval=bound2)
    return w1, b1, w2, b2


if __name__ == "__main__":
    key = jax.random.PRNGKey(0)
    kx, kp = jax.random.split(key)

    batch = 8
    input_size, hidden_size, num_classes = 784, 500, 10

    x = jax.random.normal(kx, (batch, input_size), jnp.float32)
    w1, b1, w2, b2 = init_params(kp, input_size, hidden_size, num_classes)

    out = net_forward(x, w1, b1, w2, b2)
    out = jax.block_until_ready(out)
    assert out.shape == (batch, num_classes)

    # Reference with matching bf16 matmul-input precision (f32 accumulation).
    xb = x.astype(jnp.bfloat16).astype(jnp.float32)
    w1b = w1.astype(jnp.bfloat16).astype(jnp.float32)
    w2b = w2.astype(jnp.bfloat16).astype(jnp.float32)
    h_ref = jnp.maximum(xb @ w1b + b1, 0.0)
    ref = h_ref.astype(jnp.bfloat16).astype(jnp.float32) @ w2b + b2
    assert jnp.allclose(out, ref, atol=2e-3, rtol=2e-3), "mismatch vs bf16 ref"

    # Loose sanity check against the exact f32 math.
    ref_f32 = jnp.maximum(x @ w1 + b1, 0.0) @ w2 + b2
    assert jnp.allclose(out, ref_f32, atol=5e-2, rtol=5e-2), "mismatch vs f32 ref"

    print("KERNEL_OK")
</pallas_src>

<mosaic_0001>
module attributes {stable_mosaic.version = 11 : i64} {
  func.func @mlp_kernel(%arg0: i32, %arg1: memref<128x784xbf16, #tpu.memory_space<vmem>>, %arg2: memref<784x512xbf16, #tpu.memory_space<vmem>>, %arg3: memref<1x512xf32, #tpu.memory_space<vmem>>, %arg4: memref<512x128xbf16, #tpu.memory_space<vmem>>, %arg5: memref<1x128xf32, #tpu.memory_space<vmem>>, %arg6: memref<128x128xf32, #tpu.memory_space<vmem>>) attributes {dimension_semantics = [#tpu.dimension_semantics<parallel>], iteration_bounds = array<i64: 1>, scalar_prefetch = 0 : i64, scratch_operands = 0 : i64, tpu.core_type = #tpu.core_type<tc>, window_params = [{transform_indices = @transform_0, window_bounds = array<i64: 128, 784>}, {pipeline_mode = #tpu.pipeline_mode<synchronous>, transform_indices = @transform_1, window_bounds = array<i64: 784, 512>}, {pipeline_mode = #tpu.pipeline_mode<synchronous>, transform_indices = @transform_2, window_bounds = array<i64: 1, 512>}, {pipeline_mode = #tpu.pipeline_mode<synchronous>, transform_indices = @transform_3, window_bounds = array<i64: 512, 128>}, {pipeline_mode = #tpu.pipeline_mode<synchronous>, transform_indices = @transform_4, window_bounds = array<i64: 1, 128>}, {transform_indices = @transform_5, window_bounds = array<i64: 128, 128>}]} {
    %c0 = arith.constant 0 : index
    %c0_0 = arith.constant 0 : index
    %0 = vector.load %arg1[%c0, %c0_0] : memref<128x784xbf16, #tpu.memory_space<vmem>>, vector<128x784xbf16>
    %c0_1 = arith.constant 0 : index
    %c0_2 = arith.constant 0 : index
    %1 = vector.load %arg2[%c0_1, %c0_2] : memref<784x512xbf16, #tpu.memory_space<vmem>>, vector<784x512xbf16>
    %cst = arith.constant dense<0.000000e+00> : vector<128x512xf32>
    %2 = tpu.matmul %0, %1, %cst {dimension_numbers = #tpu.dot_dimension_numbers<[1], [0], [0], [1], [0, 0, 1, 1], [], []>} : vector<128x784xbf16>, vector<784x512xbf16>, vector<128x512xf32> -> vector<128x512xf32>
    %c0_3 = arith.constant 0 : index
    %c0_4 = arith.constant 0 : index
    %3 = vector.load %arg3[%c0_3, %c0_4] : memref<1x512xf32, #tpu.memory_space<vmem>>, vector<1x512xf32>
    %4 = vector.broadcast %3 : vector<1x512xf32> to vector<128x512xf32>
    %5 = arith.addf %2, %4 : vector<128x512xf32>
    %cst_5 = arith.constant 0.000000e+00 : f32
    %6 = vector.broadcast %cst_5 : f32 to vector<128x512xf32>
    %7 = arith.maximumf %5, %6 : vector<128x512xf32>
    %8 = arith.truncf %7 : vector<128x512xf32> to vector<128x512xbf16>
    %c0_6 = arith.constant 0 : index
    %c0_7 = arith.constant 0 : index
    %9 = vector.load %arg4[%c0_6, %c0_7] : memref<512x128xbf16, #tpu.memory_space<vmem>>, vector<512x128xbf16>
    %cst_8 = arith.constant dense<0.000000e+00> : vector<128x128xf32>
    %10 = tpu.matmul %8, %9, %cst_8 {dimension_numbers = #tpu.dot_dimension_numbers<[1], [0], [0], [1], [0, 0, 1, 1], [], []>} : vector<128x512xbf16>, vector<512x128xbf16>, vector<128x128xf32> -> vector<128x128xf32>
    %c0_9 = arith.constant 0 : index
    %c0_10 = arith.constant 0 : index
    %11 = vector.load %arg5[%c0_9, %c0_10] : memref<1x128xf32, #tpu.memory_space<vmem>>, vector<1x128xf32>
    %12 = vector.broadcast %11 : vector<1x128xf32> to vector<128x128xf32>
    %13 = arith.addf %10, %12 : vector<128x128xf32>
    %c0_11 = arith.constant 0 : index
    %c0_12 = arith.constant 0 : index
    %14 = vector.load %arg6[%c0_11, %c0_12] : memref<128x128xf32, #tpu.memory_space<vmem>>, vector<128x128xf32>
    tpu.vector_store %arg6[%c0_11, %c0_12], %13 {strides = array<i32>} : memref<128x128xf32, #tpu.memory_space<vmem>>, vector<128x128xf32>,
    return
  }
  func.func @transform_0(%arg0: i32) -> (i32, i32) {
    %c0_i32 = arith.constant 0 : i32
    %c0_i32_0 = arith.constant 0 : i32
    return %arg0, %c0_i32 : i32, i32
  }
  func.func @transform_1(%arg0: i32) -> (i32, i32) {
    %c0_i32 = arith.constant 0 : i32
    %c0_i32_0 = arith.constant 0 : i32
    %c0_i32_1 = arith.constant 0 : i32
    return %c0_i32, %c0_i32_0 : i32, i32
  }
  func.func @transform_2(%arg0: i32) -> (i32, i32) {
    %c0_i32 = arith.constant 0 : i32
    %c0_i32_0 = arith.constant 0 : i32
    %c0_i32_1 = arith.constant 0 : i32
    return %c0_i32, %c0_i32_0 : i32, i32
  }
  func.func @transform_3(%arg0: i32) -> (i32, i32) {
    %c0_i32 = arith.constant 0 : i32
    %c0_i32_0 = arith.constant 0 : i32
    %c0_i32_1 = arith.constant 0 : i32
    return %c0_i32, %c0_i32_0 : i32, i32
  }
  func.func @transform_4(%arg0: i32) -> (i32, i32) {
    %c0_i32 = arith.constant 0 : i32
    %c0_i32_0 = arith.constant 0 : i32
    %c0_i32_1 = arith.constant 0 : i32
    return %c0_i32, %c0_i32_0 : i32, i32
  }
  func.func @transform_5(%arg0: i32) -> (i32, i32) {
    %c0_i32 = arith.constant 0 : i32
    %c0_i32_0 = arith.constant 0 : i32
    return %arg0, %c0_i32 : i32, i32
  }
}

</mosaic_0001>

<llo_original>
// kernel: net_forward.1
$region0: #{net_forward.1}
  #allocation0 [shape = 'u32[]', space=smem, size = 0x4, offset = 0x4, fixed_abs, tag = 'smem constant byte address 0x4 - core index']
  #allocation1 [shape = 'u32[144,128]{1,0:T(1,128)}', space=vmem, size = 0x12000, scoped, tag = 'internal scratch']
  %s0 = inlined_call_operand.vmem [shape: bf16[128,784], index: 0, kind: input, shape index: {}]
  %s1 = inlined_call_operand.vmem [shape: bf16[784,512], index: 1, kind: input, shape index: {}]
  %s2 = inlined_call_operand.vmem [shape: f32[1,512], index: 2, kind: input, shape index: {}]
  %s3 = inlined_call_operand.vmem [shape: bf16[512,128], index: 3, kind: input, shape index: {}]
  %s4 = inlined_call_operand.vmem [shape: f32[1,128], index: 4, kind: input, shape index: {}]
  %s5 = inlined_call_operand.vmem [shape: f32[128,128], index: 5, kind: output, shape index: {}]
  %s6 = sld [smem:[#allocation0]]
  $region30: #{net_forward.1} parent=0
    _
  %s8 = ssub.s32 1, %s6
  %s9 = scalar_select 0, %s8, %s6
  // Predicated region
  $region2: #{net_forward.1} parent=0 // pred_check
    _
  $region3: #{net_forward.1} parent=0 // pred_check_branch
    %11 = sbr.rel (0) target = $region5
  $region4: #{net_forward.1} parent=0 // pred_region
    _
  $region5: #{net_forward.1} parent=0 // pred_fallthru
    _
  // Predicated region
  $region6: #{net_forward.1} parent=0 // pred_check
    _
  $region7: #{net_forward.1} parent=0 // pred_check_branch
    %13 = sbr.rel (0) target = $region9
  $region8: #{net_forward.1} parent=0 // pred_region
    _
  $region9: #{net_forward.1} parent=0 // pred_fallthru
    _
  // Predicated region
  $region10: #{net_forward.1} parent=0 // pred_check
    _
  $region11: #{net_forward.1} parent=0 // pred_check_branch
    %15 = sbr.rel (0) target = $region13
  $region12: #{net_forward.1} parent=0 // pred_region
    _
  $region13: #{net_forward.1} parent=0 // pred_fallthru
    _
  // Predicated region
  $region14: #{net_forward.1} parent=0 // pred_check
    _
  $region15: #{net_forward.1} parent=0 // pred_check_branch
    %17 = sbr.rel (0) target = $region17
  $region16: #{net_forward.1} parent=0 // pred_region
    _
  $region17: #{net_forward.1} parent=0 // pred_fallthru
    _
  // Predicated region
  $region18: #{net_forward.1} parent=0 // pred_check
    _
  $region19: #{net_forward.1} parent=0 // pred_check_branch
    %19 = sbr.rel (0) target = $region21
  $region20: #{net_forward.1} parent=0 // pred_region
    _
  $region21: #{net_forward.1} parent=0 // pred_fallthru
    _
  %v21 = vld [vmem:[%s0] sm:$0xff]
  %v22 = vld [vmem:[%s0 + $0x8] sm:$0xff]
  %v23 = vld [vmem:[%s0 + $0x10] sm:$0xff]
  %v24 = vld [vmem:[%s0 + $0x18] sm:$0xf]
  %v25 = vld [vmem:[%s0 + $0x1c] sm:$0xff]
  %v26 = vld [vmem:[%s0 + $0x24] sm:$0xff]
  %v27 = vld [vmem:[%s0 + $0x2c] sm:$0xff]
  %v28 = vld [vmem:[%s0 + $0x34] sm:$0xf]
  %v29 = vld [vmem:[%s0 + $0x38] sm:$0xff]
  %v30 = vld [vmem:[%s0 + $0x40] sm:$0xff]
  %v31 = vld [vmem:[%s0 + $0x48] sm:$0xff]
  %v32 = vld [vmem:[%s0 + $0x50] sm:$0xf]
  %v33 = vld [vmem:[%s0 + $0x54] sm:$0xff]
  %v34 = vld [vmem:[%s0 + $0x5c] sm:$0xff]
  %v35 = vld [vmem:[%s0 + $0x64] sm:$0xff]
  %v36 = vld [vmem:[%s0 + $0x6c] sm:$0xf]
  %v37 = vld [vmem:[%s0 + $0x70] sm:$0xff]
  %v38 = vld [vmem:[%s0 + $0x78] sm:$0xff]
  %v39 = vld [vmem:[%s0 + $0x80] sm:$0xff]
  %v40 = vld [vmem:[%s0 + $0x88] sm:$0xf]
  %v41 = vld [vmem:[%s0 + $0x8c] sm:$0xff]
  %v42 = vld [vmem:[%s0 + $0x94] sm:$0xff]
  %v43 = vld [vmem:[%s0 + $0x9c] sm:$0xff]
  %v44 = vld [vmem:[%s0 + $0xa4] sm:$0xf]
  %v45 = vld [vmem:[%s0 + $0xa8] sm:$0xff]
  %v46 = vld [vmem:[%s0 + $0xb0] sm:$0xff]
  %v47 = vld [vmem:[%s0 + $0xb8] sm:$0xff]
  %v48 = vld [vmem:[%s0 + $0xc0] sm:$0xf]
  %v49 = vld [vmem:[%s0 + $0xc4] sm:$0xff]
  %v50 = vld [vmem:[%s0 + $0xcc] sm:$0xff]
  %v51 = vld [vmem:[%s0 + $0xd4] sm:$0xff]
  %v52 = vld [vmem:[%s0 + $0xdc] sm:$0xf]
  %v53 = vld [vmem:[%s0 + $0xe0] sm:$0xff]
  %v54 = vld [vmem:[%s0 + $0xe8] sm:$0xff]
  %v55 = vld [vmem:[%s0 + $0xf0] sm:$0xff]
  %v56 = vld [vmem:[%s0 + $0xf8] sm:$0xf]
  %v57 = vld [vmem:[%s0 + $0xfc] sm:$0xff]
  %v58 = vld [vmem:[%s0 + $0x104] sm:$0xff]
  %v59 = vld [vmem:[%s0 + $0x10c] sm:$0xff]
  %v60 = vld [vmem:[%s0 + $0x114] sm:$0xf]
  %v61 = vld [vmem:[%s0 + $0x118] sm:$0xff]
  %v62 = vld [vmem:[%s0 + $0x120] sm:$0xff]
  %v63 = vld [vmem:[%s0 + $0x128] sm:$0xff]
  %v64 = vld [vmem:[%s0 + $0x130] sm:$0xf]
  %v65 = vld [vmem:[%s0 + $0x134] sm:$0xff]
  %v66 = vld [vmem:[%s0 + $0x13c] sm:$0xff]
  %v67 = vld [vmem:[%s0 + $0x144] sm:$0xff]
  %v68 = vld [vmem:[%s0 + $0x14c] sm:$0xf]
  %v69 = vld [vmem:[%s0 + $0x150] sm:$0xff]
  %v70 = vld [vmem:[%s0 + $0x158] sm:$0xff]
  %v71 = vld [vmem:[%s0 + $0x160] sm:$0xff]
  %v72 = vld [vmem:[%s0 + $0x168] sm:$0xf]
  %v73 = vld [vmem:[%s0 + $0x16c] sm:$0xff]
  %v74 = vld [vmem:[%s0 + $0x174] sm:$0xff]
  %v75 = vld [vmem:[%s0 + $0x17c] sm:$0xff]
  %v76 = vld [vmem:[%s0 + $0x184] sm:$0xf]
  %v77 = vld [vmem:[%s0 + $0x188] sm:$0xff]
  %v78 = vld [vmem:[%s0 + $0x190] sm:$0xff]
  %v79 = vld [vmem:[%s0 + $0x198] sm:$0xff]
  %v80 = vld [vmem:[%s0 + $0x1a0] sm:$0xf]
  %v81 = vld [vmem:[%s0 + $0x1a4] sm:$0xff]
  %v82 = vld [vmem:[%s0 + $0x1ac] sm:$0xff]
  %v83 = vld [vmem:[%s0 + $0x1b4] sm:$0xff]
  %v84 = vld [vmem:[%s0 + $0x1bc] sm:$0xf]
  %v85 = vld [vmem:[%s1] sm:$0xff]
  %v86 = vld [vmem:[%s1 + $0x8] sm:$0xff]
  %v87 = vld [vmem:[%s1 + $0x10] sm:$0xff]
  %v88 = vld [vmem:[%s1 + $0x18] sm:$0xff]
  %v89 = vld [vmem:[%s1 + $0x20] sm:$0xff]
  %v90 = vld [vmem:[%s1 + $0x28] sm:$0xff]
  %v91 = vld [vmem:[%s1 + $0x30] sm:$0xff]
  %v92 = vld [vmem:[%s1 + $0x38] sm:$0xff]
  %v93 = vld [vmem:[%s1 + $0x40] sm:$0xff]
  %v94 = vld [vmem:[%s1 + $0x48] sm:$0xff]
  %v95 = vld [vmem:[%s1 + $0x50] sm:$0xff]
  %v96 = vld [vmem:[%s1 + $0x58] sm:$0xff]
  %v97 = vld [vmem:[%s1 + $0x60] sm:$0xff]
  %v98 = vld [vmem:[%s1 + $0x68] sm:$0xff]
  %v99 = vld [vmem:[%s1 + $0x70] sm:$0xff]
  %v100 = vld [vmem:[%s1 + $0x78] sm:$0xff]
  %v101 = vld [vmem:[%s1 + $0x80] sm:$0xff]
  %v102 = vld [vmem:[%s1 + $0x88] sm:$0xff]
  %v103 = vld [vmem:[%s1 + $0x90] sm:$0xff]
  %v104 = vld [vmem:[%s1 + $0x98] sm:$0xff]
  %v105 = vld [vmem:[%s1 + $0xa0] sm:$0xff]
  %v106 = vld [vmem:[%s1 + $0xa8] sm:$0xff]
  %v107 = vld [vmem:[%s1 + $0xb0] sm:$0xff]
  %v108 = vld [vmem:[%s1 + $0xb8] sm:$0xff]
  %v109 = vld [vmem:[%s1 + $0xc0] sm:$0xff]
  %v110 = vld [vmem:[%s1 + $0xc8] sm:$0xff]
  %v111 = vld [vmem:[%s1 + $0xd0] sm:$0xff]
  %v112 = vld [vmem:[%s1 + $0xd8] sm:$0xff]
  %v113 = vld [vmem:[%s1 + $0xe0] sm:$0xff]
  %v114 = vld [vmem:[%s1 + $0xe8] sm:$0xff]
  %v115 = vld [vmem:[%s1 + $0xf0] sm:$0xff]
  %v116 = vld [vmem:[%s1 + $0xf8] sm:$0xff]
  %v117 = vld [vmem:[%s1 + $0x100] sm:$0xff]
  %v118 = vld [vmem:[%s1 + $0x108] sm:$0xff]
  %v119 = vld [vmem:[%s1 + $0x110] sm:$0xff]
  %v120 = vld [vmem:[%s1 + $0x118] sm:$0xff]
  %v121 = vld [vmem:[%s1 + $0x120] sm:$0xff]
  %v122 = vld [vmem:[%s1 + $0x128] sm:$0xff]
  %v123 = vld [vmem:[%s1 + $0x130] sm:$0xff]
  %v124 = vld [vmem:[%s1 + $0x138] sm:$0xff]
  %v125 = vld [vmem:[%s1 + $0x140] sm:$0xff]
  %v126 = vld [vmem:[%s1 + $0x148] sm:$0xff]
  %v127 = vld [vmem:[%s1 + $0x150] sm:$0xff]
  %v128 = vld [vmem:[%s1 + $0x158] sm:$0xff]
  %v129 = vld [vmem:[%s1 + $0x160] sm:$0xff]
  %v130 = vld [vmem:[%s1 + $0x168] sm:$0xff]
  %v131 = vld [vmem:[%s1 + $0x170] sm:$0xff]
  %v132 = vld [vmem:[%s1 + $0x178] sm:$0xff]
  %v133 = vld [vmem:[%s1 + $0x180] sm:$0xff]
  %v134 = vld [vmem:[%s1 + $0x188] sm:$0xff]
  %v135 = vld [vmem:[%s1 + $0x190] sm:$0xff]
  %v136 = vld [vmem:[%s1 + $0x198] sm:$0xff]
  %v137 = vld [vmem:[%s1 + $0x1a0] sm:$0xff]
  %v138 = vld [vmem:[%s1 + $0x1a8] sm:$0xff]
  %v139 = vld [vmem:[%s1 + $0x1b0] sm:$0xff]
  %v140 = vld [vmem:[%s1 + $0x1b8] sm:$0xff]
  %v141 = vld [vmem:[%s1 + $0x1c0] sm:$0xff]
  %v142 = vld [vmem:[%s1 + $0x1c8] sm:$0xff]
  %v143 = vld [vmem:[%s1 + $0x1d0] sm:$0xff]
  %v144 = vld [vmem:[%s1 + $0x1d8] sm:$0xff]
  %v145 = vld [vmem:[%s1 + $0x1e0] sm:$0xff]
  %v146 = vld [vmem:[%s1 + $0x1e8] sm:$0xff]
  %v147 = vld [vmem:[%s1 + $0x1f0] sm:$0xff]
  %v148 = vld [vmem:[%s1 + $0x1f8] sm:$0xff]
  %v149 = vld [vmem:[%s1 + $0x200] sm:$0xff]
  %v150 = vld [vmem:[%s1 + $0x208] sm:$0xff]
  %v151 = vld [vmem:[%s1 + $0x210] sm:$0xff]
  %v152 = vld [vmem:[%s1 + $0x218] sm:$0xff]
  %v153 = vld [vmem:[%s1 + $0x220] sm:$0xff]
  %v154 = vld [vmem:[%s1 + $0x228] sm:$0xff]
  %v155 = vld [vmem:[%s1 + $0x230] sm:$0xff]
  %v156 = vld [vmem:[%s1 + $0x238] sm:$0xff]
  %v157 = vld [vmem:[%s1 + $0x240] sm:$0xff]
  %v158 = vld [vmem:[%s1 + $0x248] sm:$0xff]
  %v159 = vld [vmem:[%s1 + $0x250] sm:$0xff]
  %v160 = vld [vmem:[%s1 + $0x258] sm:$0xff]
  %v161 = vld [vmem:[%s1 + $0x260] sm:$0xff]
  %v162 = vld [vmem:[%s1 + $0x268] sm:$0xff]
  %v163 = vld [vmem:[%s1 + $0x270] sm:$0xff]
  %v164 = vld [vmem:[%s1 + $0x278] sm:$0xff]
  %v165 = vld [vmem:[%s1 + $0x280] sm:$0xff]
  %v166 = vld [vmem:[%s1 + $0x288] sm:$0xff]
  %v167 = vld [vmem:[%s1 + $0x290] sm:$0xff]
  %v168 = vld [vmem:[%s1 + $0x298] sm:$0xff]
  %v169 = vld [vmem:[%s1 + $0x2a0] sm:$0xff]
  %v170 = vld [vmem:[%s1 + $0x2a8] sm:$0xff]
  %v171 = vld [vmem:[%s1 + $0x2b0] sm:$0xff]
  %v172 = vld [vmem:[%s1 + $0x2b8] sm:$0xff]
  %v173 = vld [vmem:[%s1 + $0x2c0] sm:$0xff]
  %v174 = vld [vmem:[%s1 + $0x2c8] sm:$0xff]
  %v175 = vld [vmem:[%s1 + $0x2d0] sm:$0xff]
  %v176 = vld [vmem:[%s1 + $0x2d8] sm:$0xff]
  %v177 = vld [vmem:[%s1 + $0x2e0] sm:$0xff]
  %v178 = vld [vmem:[%s1 + $0x2e8] sm:$0xff]
  %v179 = vld [vmem:[%s1 + $0x2f0] sm:$0xff]
  %v180 = vld [vmem:[%s1 + $0x2f8] sm:$0xff]
  %v181 = vld [vmem:[%s1 + $0x300] sm:$0xff]
  %v182 = vld [vmem:[%s1 + $0x308] sm:$0xff]
  %v183 = vld [vmem:[%s1 + $0x310] sm:$0xff]
  %v184 = vld [vmem:[%s1 + $0x318] sm:$0xff]
  %v185 = vld [vmem:[%s1 + $0x320] sm:$0xff]
  %v186 = vld [vmem:[%s1 + $0x328] sm:$0xff]
  %v187 = vld [vmem:[%s1 + $0x330] sm:$0xff]
  %v188 = vld [vmem:[%s1 + $0x338] sm:$0xff]
  %v189 = vld [vmem:[%s1 + $0x340] sm:$0xff]
  %v190 = vld [vmem:[%s1 + $0x348] sm:$0xff]
  %v191 = vld [vmem:[%s1 + $0x350] sm:$0xff]
  %v192 = vld [vmem:[%s1 + $0x358] sm:$0xff]
  %v193 = vld [vmem:[%s1 + $0x360] sm:$0xff]
  %v194 = vld [vmem:[%s1 + $0x368] sm:$0xff]
  %v195 = vld [vmem:[%s1 + $0x370] sm:$0xff]
  %v196 = vld [vmem:[%s1 + $0x378] sm:$0xff]
  %v197 = vld [vmem:[%s1 + $0x380] sm:$0xff]
  %v198 = vld [vmem:[%s1 + $0x388] sm:$0xff]
  %v199 = vld [vmem:[%s1 + $0x390] sm:$0xff]
  %v200 = vld [vmem:[%s1 + $0x398] sm:$0xff]
  %v201 = vld [vmem:[%s1 + $0x3a0] sm:$0xff]
  %v202 = vld [vmem:[%s1 + $0x3a8] sm:$0xff]
  %v203 = vld [vmem:[%s1 + $0x3b0] sm:$0xff]
  %v204 = vld [vmem:[%s1 + $0x3b8] sm:$0xff]
  %v205 = vld [vmem:[%s1 + $0x3c0] sm:$0xff]
  %v206 = vld [vmem:[%s1 + $0x3c8] sm:$0xff]
  %v207 = vld [vmem:[%s1 + $0x3d0] sm:$0xff]
  %v208 = vld [vmem:[%s1 + $0x3d8] sm:$0xff]
  %v209 = vld [vmem:[%s1 + $0x3e0] sm:$0xff]
  %v210 = vld [vmem:[%s1 + $0x3e8] sm:$0xff]
  %v211 = vld [vmem:[%s1 + $0x3f0] sm:$0xff]
  %v212 = vld [vmem:[%s1 + $0x3f8] sm:$0xff]
  %v213 = vld [vmem:[%s1 + $0x400] sm:$0xff]
  %v214 = vld [vmem:[%s1 + $0x408] sm:$0xff]
  %v215 = vld [vmem:[%s1 + $0x410] sm:$0xff]
  %v216 = vld [vmem:[%s1 + $0x418] sm:$0xff]
  %v217 = vld [vmem:[%s1 + $0x420] sm:$0xff]
  %v218 = vld [vmem:[%s1 + $0x428] sm:$0xff]
  %v219 = vld [vmem:[%s1 + $0x430] sm:$0xff]
  %v220 = vld [vmem:[%s1 + $0x438] sm:$0xff]
  %v221 = vld [vmem:[%s1 + $0x440] sm:$0xff]
  %v222 = vld [vmem:[%s1 + $0x448] sm:$0xff]
  %v223 = vld [vmem:[%s1 + $0x450] sm:$0xff]
  %v224 = vld [vmem:[%s1 + $0x458] sm:$0xff]
  %v225 = vld [vmem:[%s1 + $0x460] sm:$0xff]
  %v226 = vld [vmem:[%s1 + $0x468] sm:$0xff]
  %v227 = vld [vmem:[%s1 + $0x470] sm:$0xff]
  %v228 = vld [vmem:[%s1 + $0x478] sm:$0xff]
  %v229 = vld [vmem:[%s1 + $0x480] sm:$0xff]
  %v230 = vld [vmem:[%s1 + $0x488] sm:$0xff]
  %v231 = vld [vmem:[%s1 + $0x490] sm:$0xff]
  %v232 = vld [vmem:[%s1 + $0x498] sm:$0xff]
  %v233 = vld [vmem:[%s1 + $0x4a0] sm:$0xff]
  %v234 = vld [vmem:[%s1 + $0x4a8] sm:$0xff]
  %v235 = vld [vmem:[%s1 + $0x4b0] sm:$0xff]
  %v236 = vld [vmem:[%s1 + $0x4b8] sm:$0xff]
  %v237 = vld [vmem:[%s1 + $0x4c0] sm:$0xff]
  %v238 = vld [vmem:[%s1 + $0x4c8] sm:$0xff]
  %v239 = vld [vmem:[%s1 + $0x4d0] sm:$0xff]
  %v240 = vld [vmem:[%s1 + $0x4d8] sm:$0xff]
  %v241 = vld [vmem:[%s1 + $0x4e0] sm:$0xff]
  %v242 = vld [vmem:[%s1 + $0x4e8] sm:$0xff]
  %v243 = vld [vmem:[%s1 + $0x4f0] sm:$0xff]
  %v244 = vld [vmem:[%s1 + $0x4f8] sm:$0xff]
  %v245 = vld [vmem:[%s1 + $0x500] sm:$0xff]
  %v246 = vld [vmem:[%s1 + $0x508] sm:$0xff]
  %v247 = vld [vmem:[%s1 + $0x510] sm:$0xff]
  %v248 = vld [vmem:[%s1 + $0x518] sm:$0xff]
  %v249 = vld [vmem:[%s1 + $0x520] sm:$0xff]
  %v250 = vld [vmem:[%s1 + $0x528] sm:$0xff]
  %v251 = vld [vmem:[%s1 + $0x530] sm:$0xff]
  %v252 = vld [vmem:[%s1 + $0x538] sm:$0xff]
  %v253 = vld [vmem:[%s1 + $0x540] sm:$0xff]
  %v254 = vld [vmem:[%s1 + $0x548] sm:$0xff]
  %v255 = vld [vmem:[%s1 + $0x550] sm:$0xff]
  %v256 = vld [vmem:[%s1 + $0x558] sm:$0xff]
  %v257 = vld [vmem:[%s1 + $0x560] sm:$0xff]
  %v258 = vld [vmem:[%s1 + $0x568] sm:$0xff]
  %v259 = vld [vmem:[%s1 + $0x570] sm:$0xff]
  %v260 = vld [vmem:[%s1 + $0x578] sm:$0xff]
  %v261 = vld [vmem:[%s1 + $0x580] sm:$0xff]
  %v262 = vld [vmem:[%s1 + $0x588] sm:$0xff]
  %v263 = vld [vmem:[%s1 + $0x590] sm:$0xff]
  %v264 = vld [vmem:[%s1 + $0x598] sm:$0xff]
  %v265 = vld [vmem:[%s1 + $0x5a0] sm:$0xff]
  %v266 = vld [vmem:[%s1 + $0x5a8] sm:$0xff]
  %v267 = vld [vmem:[%s1 + $0x5b0] sm:$0xff]
  %v268 = vld [vmem:[%s1 + $0x5b8] sm:$0xff]
  %v269 = vld [vmem:[%s1 + $0x5c0] sm:$0xff]
  %v270 = vld [vmem:[%s1 + $0x5c8] sm:$0xff]
  %v271 = vld [vmem:[%s1 + $0x5d0] sm:$0xff]
  %v272 = vld [vmem:[%s1 + $0x5d8] sm:$0xff]
  %v273 = vld [vmem:[%s1 + $0x5e0] sm:$0xff]
  %v274 = vld [vmem:[%s1 + $0x5e8] sm:$0xff]
  %v275 = vld [vmem:[%s1 + $0x5f0] sm:$0xff]
  %v276 = vld [vmem:[%s1 + $0x5f8] sm:$0xff]
  %v277 = vld [vmem:[%s1 + $0x600] sm:$0xff]
  %v278 = vld [vmem:[%s1 + $0x608] sm:$0xff]
  %v279 = vld [vmem:[%s1 + $0x610] sm:$0xff]
  %v280 = vld [vmem:[%s1 + $0x618] sm:$0xff]
  %v281 = vld [vmem:[%s2] sm:$0xf]
  %v283 = vlaneseq
  %v284 = vshrl.u32 %v283, 7
  %v285 = vsub.s32 0, %v284
  %v286 = vrot.slane %v281, %v285
  %v287 = vlaneseq
  %v288 = vshrl.u32 %v287, 7
  %v289 = vsub.s32 1, %v288
  %v290 = vrot.slane %v281, %v289
  %v291 = vlaneseq
  %v292 = vshrl.u32 %v291, 7
  %v293 = vsub.s32 2, %v292
  %v294 = vrot.slane %v281, %v293
  %v295 = vlaneseq
  %v296 = vshrl.u32 %v295, 7
  %v297 = vsub.s32 3, %v296
  %v298 = vrot.slane %v281, %v297
  %v367 = vunpack.c.l.b16 %v21
  %v368 = vunpack.c.h.b16 %v21
  %v369 = vunpack.c.l.b16 %v22
  %v370 = vunpack.c.h.b16 %v22
  %v371 = vunpack.c.l.b16 %v23
  %v372 = vunpack.c.h.b16 %v23
  %v373 = vunpack.c.l.b16 %v24
  %v374 = vunpack.c.l.b16 %v25
  %v375 = vunpack.c.h.b16 %v25
  %v376 = vunpack.c.l.b16 %v26
  %v377 = vunpack.c.h.b16 %v26
  %v378 = vunpack.c.l.b16 %v27
  %v379 = vunpack.c.h.b16 %v27
  %v380 = vunpack.c.l.b16 %v28
  %v381 = vunpack.c.l.b16 %v29
  %v382 = vunpack.c.h.b16 %v29
  %v383 = vunpack.c.l.b16 %v30
  %v384 = vunpack.c.h.b16 %v30
  %v385 = vunpack.c.l.b16 %v31
  %v386 = vunpack.c.h.b16 %v31
  %v387 = vunpack.c.l.b16 %v32
  %v388 = vunpack.c.l.b16 %v33
  %v389 = vunpack.c.h.b16 %v33
  %v390 = vunpack.c.l.b16 %v34
  %v391 = vunpack.c.h.b16 %v34
  %v392 = vunpack.c.l.b16 %v35
  %v393 = vunpack.c.h.b16 %v35
  %v394 = vunpack.c.l.b16 %v36
  %v395 = vunpack.c.l.b16 %v37
  %v396 = vunpack.c.h.b16 %v37
  %v397 = vunpack.c.l.b16 %v38
  %v398 = vunpack.c.h.b16 %v38
  %v399 = vunpack.c.l.b16 %v39
  %v400 = vunpack.c.h.b16 %v39
  %v401 = vunpack.c.l.b16 %v40
  %v402 = vunpack.c.l.b16 %v41
  %v403 = vunpack.c.h.b16 %v41
  %v404 = vunpack.c.l.b16 %v42
  %v405 = vunpack.c.h.b16 %v42
  %v406 = vunpack.c.l.b16 %v43
  %v407 = vunpack.c.h.b16 %v43
  %v408 = vunpack.c.l.b16 %v44
  %v409 = vunpack.c.l.b16 %v45
  %v410 = vunpack.c.h.b16 %v45
  %v411 = vunpack.c.l.b16 %v46
  %v412 = vunpack.c.h.b16 %v46
  %v413 = vunpack.c.l.b16 %v47
  %v414 = vunpack.c.h.b16 %v47
  %v415 = vunpack.c.l.b16 %v48
  %v416 = vunpack.c.l.b16 %v49
  %v417 = vunpack.c.h.b16 %v49
  %v418 = vunpack.c.l.b16 %v50
  %v419 = vunpack.c.h.b16 %v50
  %v420 = vunpack.c.l.b16 %v51
  %v421 = vunpack.c.h.b16 %v51
  %v422 = vunpack.c.l.b16 %v52
  %v423 = vunpack.c.l.b16 %v53
  %v424 = vunpack.c.h.b16 %v53
  %v425 = vunpack.c.l.b16 %v54
  %v426 = vunpack.c.h.b16 %v54
  %v427 = vunpack.c.l.b16 %v55
  %v428 = vunpack.c.h.b16 %v55
  %v429 = vunpack.c.l.b16 %v56
  %v430 = vunpack.c.l.b16 %v57
  %v431 = vunpack.c.h.b16 %v57
  %v432 = vunpack.c.l.b16 %v58
  %v433 = vunpack.c.h.b16 %v58
  %v434 = vunpack.c.l.b16 %v59
  %v435 = vunpack.c.h.b16 %v59
  %v436 = vunpack.c.l.b16 %v60
  %v437 = vunpack.c.l.b16 %v61
  %v438 = vunpack.c.h.b16 %v61
  %v439 = vunpack.c.l.b16 %v62
  %v440 = vunpack.c.h.b16 %v62
  %v441 = vunpack.c.l.b16 %v63
  %v442 = vunpack.c.h.b16 %v63
  %v443 = vunpack.c.l.b16 %v64
  %v444 = vunpack.c.l.b16 %v65
  %v445 = vunpack.c.h.b16 %v65
  %v446 = vunpack.c.l.b16 %v66
  %v447 = vunpack.c.h.b16 %v66
  %v448 = vunpack.c.l.b16 %v67
  %v449 = vunpack.c.h.b16 %v67
  %v450 = vunpack.c.l.b16 %v68
  %v451 = vunpack.c.l.b16 %v69
  %v452 = vunpack.c.h.b16 %v69
  %v453 = vunpack.c.l.b16 %v70
  %v454 = vunpack.c.h.b16 %v70
  %v455 = vunpack.c.l.b16 %v71
  %v456 = vunpack.c.h.b16 %v71
  %v457 = vunpack.c.l.b16 %v72
  %v458 = vunpack.c.l.b16 %v73
  %v459 = vunpack.c.h.b16 %v73
  %v460 = vunpack.c.l.b16 %v74
  %v461 = vunpack.c.h.b16 %v74
  %v462 = vunpack.c.l.b16 %v75
  %v463 = vunpack.c.h.b16 %v75
  %v464 = vunpack.c.l.b16 %v76
  %v465 = vunpack.c.l.b16 %v77
  %v466 = vunpack.c.h.b16 %v77
  %v467 = vunpack.c.l.b16 %v78
  %v468 = vunpack.c.h.b16 %v78
  %v469 = vunpack.c.l.b16 %v79
  %v470 = vunpack.c.h.b16 %v79
  %v471 = vunpack.c.l.b16 %v80
  %v472 = vunpack.c.l.b16 %v81
  %v473 = vunpack.c.h.b16 %v81
  %v474 = vunpack.c.l.b16 %v82
  %v475 = vunpack.c.h.b16 %v82
  %v476 = vunpack.c.l.b16 %v83
  %v477 = vunpack.c.h.b16 %v83
  %v478 = vunpack.c.l.b16 %v84
  %v479 = vpack.c.b16 %v374, %v367
  %v480 = vpack.c.b16 %v375, %v368
  %v481 = vpack.c.b16 %v376, %v369
  %v482 = vpack.c.b16 %v377, %v370
  %v483 = vpack.c.b16 %v378, %v371
  %v484 = vpack.c.b16 %v379, %v372
  %v485 = vpack.c.b16 %v380, %v373
  %v486 = vpack.c.b16 %v388, %v381
  %v487 = vpack.c.b16 %v389, %v382
  %v488 = vpack.c.b16 %v390, %v383
  %v489 = vpack.c.b16 %v391, %v384
  %v490 = vpack.c.b16 %v392, %v385
  %v491 = vpack.c.b16 %v393, %v386
  %v492 = vpack.c.b16 %v394, %v387
  %v493 = vpack.c.b16 %v402, %v395
  %v494 = vpack.c.b16 %v403, %v396
  %v495 = vpack.c.b16 %v404, %v397
  %v496 = vpack.c.b16 %v405, %v398
  %v497 = vpack.c.b16 %v406, %v399
  %v498 = vpack.c.b16 %v407, %v400
  %v499 = vpack.c.b16 %v408, %v401
  %v500 = vpack.c.b16 %v416, %v409
  %v501 = vpack.c.b16 %v417, %v410
  %v502 = vpack.c.b16 %v418, %v411
  %v503 = vpack.c.b16 %v419, %v412
  %v504 = vpack.c.b16 %v420, %v413
  %v505 = vpack.c.b16 %v421, %v414
  %v506 = vpack.c.b16 %v422, %v415
  %v507 = vpack.c.b16 %v430, %v423
  %v508 = vpack.c.b16 %v431, %v424
  %v509 = vpack.c.b16 %v432, %v425
  %v510 = vpack.c.b16 %v433, %v426
  %v511 = vpack.c.b16 %v434, %v427
  %v512 = vpack.c.b16 %v435, %v428
  %v513 = vpack.c.b16 %v436, %v429
  %v514 = vpack.c.b16 %v444, %v437
  %v515 = vpack.c.b16 %v445, %v438
  %v516 = vpack.c.b16 %v446, %v439
  %v517 = vpack.c.b16 %v447, %v440
  %v518 = vpack.c.b16 %v448, %v441
  %v519 = vpack.c.b16 %v449, %v442
  %v520 = vpack.c.b16 %v450, %v443
  %v521 = vpack.c.b16 %v458, %v451
  %v522 = vpack.c.b16 %v459, %v452
  %v523 = vpack.c.b16 %v460, %v453
  %v524 = vpack.c.b16 %v461, %v454
  %v525 = vpack.c.b16 %v462, %v455
  %v526 = vpack.c.b16 %v463, %v456
  %v527 = vpack.c.b16 %v464, %v457
  %v528 = vpack.c.b16 %v472, %v465
  %v529 = vpack.c.b16 %v473, %v466
  %v530 = vpack.c.b16 %v474, %v467
  %v531 = vpack.c.b16 %v475, %v468
  %v532 = vpack.c.b16 %v476, %v469
  %v533 = vpack.c.b16 %v477, %v470
  %v534 = vpack.c.b16 %v478, %v471
  %v779 = vunpack.c.l.b16 %v85
  %v780 = vunpack.c.h.b16 %v85
  %v781 = vunpack.c.l.b16 %v86
  %v782 = vunpack.c.h.b16 %v86
  %v783 = vunpack.c.l.b16 %v87
  %v784 = vunpack.c.h.b16 %v87
  %v785 = vunpack.c.l.b16 %v88
  %v786 = vunpack.c.h.b16 %v88
  %v787 = vunpack.c.l.b16 %v89
  %v788 = vunpack.c.h.b16 %v89
  %v789 = vunpack.c.l.b16 %v90
  %v790 = vunpack.c.h.b16 %v90
  %v791 = vunpack.c.l.b16 %v91
  %v792 = vunpack.c.h.b16 %v91
  %v793 = vunpack.c.l.b16 %v92
  %v794 = vunpack.c.h.b16 %v92
  %v795 = vunpack.c.l.b16 %v93
  %v796 = vunpack.c.h.b16 %v93
  %v797 = vunpack.c.l.b16 %v94
  %v798 = vunpack.c.h.b16 %v94
  %v799 = vunpack.c.l.b16 %v95
  %v800 = vunpack.c.h.b16 %v95
  %v801 = vunpack.c.l.b16 %v96
  %v802 = vunpack.c.h.b16 %v96
  %v803 = vunpack.c.l.b16 %v97
  %v804 = vunpack.c.h.b16 %v97
  %v805 = vunpack.c.l.b16 %v98
  %v806 = vunpack.c.h.b16 %v98
  %v807 = vunpack.c.l.b16 %v99
  %v808 = vunpack.c.h.b16 %v99
  %v809 = vunpack.c.l.b16 %v100
  %v810 = vunpack.c.h.b16 %v100
  %v811 = vunpack.c.l.b16 %v101
  %v812 = vunpack.c.h.b16 %v101
  %v813 = vunpack.c.l.b16 %v102
  %v814 = vunpack.c.h.b16 %v102
  %v815 = vunpack.c.l.b16 %v103
  %v816 = vunpack.c.h.b16 %v103
  %v817 = vunpack.c.l.b16 %v104
  %v818 = vunpack.c.h.b16 %v104
  %v819 = vunpack.c.l.b16 %v105
  %v820 = vunpack.c.h.b16 %v105
  %v821 = vunpack.c.l.b16 %v106
  %v822 = vunpack.c.h.b16 %v106
  %v823 = vunpack.c.l.b16 %v107
  %v824 = vunpack.c.h.b16 %v107
  %v825 = vunpack.c.l.b16 %v108
  %v826 = vunpack.c.h.b16 %v108
  %v827 = vunpack.c.l.b16 %v109
  %v828 = vunpack.c.h.b16 %v109
  %v829 = vunpack.c.l.b16 %v110
  %v830 = vunpack.c.h.b16 %v110
  %v831 = vunpack.c.l.b16 %v111
  %v832 = vunpack.c.h.b16 %v111
  %v833 = vunpack.c.l.b16 %v112
  %v834 = vunpack.c.h.b16 %v112
  %v835 = vunpack.c.l.b16 %v113
  %v836 = vunpack.c.h.b16 %v113
  %v837 = vunpack.c.l.b16 %v114
  %v838 = vunpack.c.h.b16 %v114
  %v839 = vunpack.c.l.b16 %v115
  %v840 = vunpack.c.h.b16 %v115
  %v841 = vunpack.c.l.b16 %v116
  %v842 = vunpack.c.h.b16 %v116
  %v843 = vunpack.c.l.b16 %v117
  %v844 = vunpack.c.h.b16 %v117
  %v845 = vunpack.c.l.b16 %v118
  %v846 = vunpack.c.h.b16 %v118
  %v847 = vunpack.c.l.b16 %v119
  %v848 = vunpack.c.h.b16 %v119
  %v849 = vunpack.c.l.b16 %v120
  %v850 = vunpack.c.h.b16 %v120
  %v851 = vunpack.c.l.b16 %v121
  %v852 = vunpack.c.h.b16 %v121
  %v853 = vunpack.c.l.b16 %v122
  %v854 = vunpack.c.h.b16 %v122
  %v855 = vunpack.c.l.b16 %v123
  %v856 = vunpack.c.h.b16 %v123
  %v857 = vunpack.c.l.b16 %v124
  %v858 = vunpack.c.h.b16 %v124
  %v859 = vunpack.c.l.b16 %v125
  %v860 = vunpack.c.h.b16 %v125
  %v861 = vunpack.c.l.b16 %v126
  %v862 = vunpack.c.h.b16 %v126
  %v863 = vunpack.c.l.b16 %v127
  %v864 = vunpack.c.h.b16 %v127
  %v865 = vunpack.c.l.b16 %v128
  %v866 = vunpack.c.h.b16 %v128
  %v867 = vunpack.c.l.b16 %v129
  %v868 = vunpack.c.h.b16 %v129
  %v869 = vunpack.c.l.b16 %v130
  %v870 = vunpack.c.h.b16 %v130
  %v871 = vunpack.c.l.b16 %v131
  %v872 = vunpack.c.h.b16 %v131
  %v873 = vunpack.c.l.b16 %v132
  %v874 = vunpack.c.h.b16 %v132
  %v875 = vunpack.c.l.b16 %v133
  %v876 = vunpack.c.h.b16 %v133
  %v877 = vunpack.c.l.b16 %v134
  %v878 = vunpack.c.h.b16 %v134
  %v879 = vunpack.c.l.b16 %v135
  %v880 = vunpack.c.h.b16 %v135
  %v881 = vunpack.c.l.b16 %v136
  %v882 = vunpack.c.h.b16 %v136
  %v883 = vunpack.c.l.b16 %v137
  %v884 = vunpack.c.h.b16 %v137
  %v885 = vunpack.c.l.b16 %v138
  %v886 = vunpack.c.h.b16 %v138
  %v887 = vunpack.c.l.b16 %v139
  %v888 = vunpack.c.h.b16 %v139
  %v889 = vunpack.c.l.b16 %v140
  %v890 = vunpack.c.h.b16 %v140
  %v891 = vunpack.c.l.b16 %v141
  %v892 = vunpack.c.h.b16 %v141
  %v893 = vunpack.c.l.b16 %v142
  %v894 = vunpack.c.h.b16 %v142
  %v895 = vunpack.c.l.b16 %v143
  %v896 = vunpack.c.h.b16 %v143
  %v897 = vunpack.c.l.b16 %v144
  %v898 = vunpack.c.h.b16 %v144
  %v899 = vunpack.c.l.b16 %v145
  %v900 = vunpack.c.h.b16 %v145
  %v901 = vunpack.c.l.b16 %v146
  %v902 = vunpack.c.h.b16 %v146
  %v903 = vunpack.c.l.b16 %v147
  %v904 = vunpack.c.h.b16 %v147
  %v905 = vunpack.c.l.b16 %v148
  %v906 = vunpack.c.h.b16 %v148
  %v907 = vunpack.c.l.b16 %v149
  %v908 = vunpack.c.h.b16 %v149
  %v909 = vunpack.c.l.b16 %v150
  %v910 = vunpack.c.h.b16 %v150
  %v911 = vunpack.c.l.b16 %v151
  %v912 = vunpack.c.h.b16 %v151
  %v913 = vunpack.c.l.b16 %v152
  %v914 = vunpack.c.h.b16 %v152
  %v915 = vunpack.c.l.b16 %v153
  %v916 = vunpack.c.h.b16 %v153
  %v917 = vunpack.c.l.b16 %v154
  %v918 = vunpack.c.h.b16 %v154
  %v919 = vunpack.c.l.b16 %v155
  %v920 = vunpack.c.h.b16 %v155
  %v921 = vunpack.c.l.b16 %v156
  %v922 = vunpack.c.h.b16 %v156
  %v923 = vunpack.c.l.b16 %v157
  %v924 = vunpack.c.h.b16 %v157
  %v925 = vunpack.c.l.b16 %v158
  %v926 = vunpack.c.h.b16 %v158
  %v927 = vunpack.c.l.b16 %v159
  %v928 = vunpack.c.h.b16 %v159
  %v929 = vunpack.c.l.b16 %v160
  %v930 = vunpack.c.h.b16 %v160
  %v931 = vunpack.c.l.b16 %v161
  %v932 = vunpack.c.h.b16 %v161
  %v933 = vunpack.c.l.b16 %v162
  %v934 = vunpack.c.h.b16 %v162
  %v935 = vunpack.c.l.b16 %v163
  %v936 = vunpack.c.h.b16 %v163
  %v937 = vunpack.c.l.b16 %v164
  %v938 = vunpack.c.h.b16 %v164
  %v939 = vunpack.c.l.b16 %v165
  %v940 = vunpack.c.h.b16 %v165
  %v941 = vunpack.c.l.b16 %v166
  %v942 = vunpack.c.h.b16 %v166
  %v943 = vunpack.c.l.b16 %v167
  %v944 = vunpack.c.h.b16 %v167
  %v945 = vunpack.c.l.b16 %v168
  %v946 = vunpack.c.h.b16 %v168
  %v947 = vunpack.c.l.b16 %v169
  %v948 = vunpack.c.h.b16 %v169
  %v949 = vunpack.c.l.b16 %v170
  %v950 = vunpack.c.h.b16 %v170
  %v951 = vunpack.c.l.b16 %v171
  %v952 = vunpack.c.h.b16 %v171
  %v953 = vunpack.c.l.b16 %v172
  %v954 = vunpack.c.h.b16 %v172
  %v955 = vunpack.c.l.b16 %v173
  %v956 = vunpack.c.h.b16 %v173
  %v957 = vunpack.c.l.b16 %v174
  %v958 = vunpack.c.h.b16 %v174
  %v959 = vunpack.c.l.b16 %v175
  %v960 = vunpack.c.h.b16 %v175
  %v961 = vunpack.c.l.b16 %v176
  %v962 = vunpack.c.h.b16 %v176
  %v963 = vunpack.c.l.b16 %v177
  %v964 = vunpack.c.h.b16 %v177
  %v965 = vunpack.c.l.b16 %v178
  %v966 = vunpack.c.h.b16 %v178
  %v967 = vunpack.c.l.b16 %v179
  %v968 = vunpack.c.h.b16 %v179
  %v969 = vunpack.c.l.b16 %v180
  %v970 = vunpack.c.h.b16 %v180
  %v971 = vunpack.c.l.b16 %v181
  %v972 = vunpack.c.h.b16 %v181
  %v973 = vunpack.c.l.b16 %v182
  %v974 = vunpack.c.h.b16 %v182
  %v975 = vunpack.c.l.b16 %v183
  %v976 = vunpack.c.h.b16 %v183
  %v977 = vunpack.c.l.b16 %v184
  %v978 = vunpack.c.h.b16 %v184
  %v979 = vunpack.c.l.b16 %v185
  %v980 = vunpack.c.h.b16 %v185
  %v981 = vunpack.c.l.b16 %v186
  %v982 = vunpack.c.h.b16 %v186
  %v983 = vunpack.c.l.b16 %v187
  %v984 = vunpack.c.h.b16 %v187
  %v985 = vunpack.c.l.b16 %v188
  %v986 = vunpack.c.h.b16 %v188
  %v987 = vunpack.c.l.b16 %v189
  %v988 = vunpack.c.h.b16 %v189
  %v989 = vunpack.c.l.b16 %v190
  %v990 = vunpack.c.h.b16 %v190
  %v991 = vunpack.c.l.b16 %v191
  %v992 = vunpack.c.h.b16 %v191
  %v993 = vunpack.c.l.b16 %v192
  %v994 = vunpack.c.h.b16 %v192
  %v995 = vunpack.c.l.b16 %v193
  %v996 = vunpack.c.h.b16 %v193
  %v997 = vunpack.c.l.b16 %v194
  %v998 = vunpack.c.h.b16 %v194
  %v999 = vunpack.c.l.b16 %v195
  %v1000 = vunpack.c.h.b16 %v195
  %v1001 = vunpack.c.l.b16 %v196
  %v1002 = vunpack.c.h.b16 %v196
  %v1003 = vunpack.c.l.b16 %v197
  %v1004 = vunpack.c.h.b16 %v197
  %v1005 = vunpack.c.l.b16 %v198
  %v1006 = vunpack.c.h.b16 %v198
  %v1007 = vunpack.c.l.b16 %v199
  %v1008 = vunpack.c.h.b16 %v199
  %v1009 = vunpack.c.l.b16 %v200
  %v1010 = vunpack.c.h.b16 %v200
  %v1011 = vunpack.c.l.b16 %v201
  %v1012 = vunpack.c.h.b16 %v201
  %v1013 = vunpack.c.l.b16 %v202
  %v1014 = vunpack.c.h.b16 %v202
  %v1015 = vunpack.c.l.b16 %v203
  %v1016 = vunpack.c.h.b16 %v203
  %v1017 = vunpack.c.l.b16 %v204
  %v1018 = vunpack.c.h.b16 %v204
  %v1019 = vunpack.c.l.b16 %v205
  %v1020 = vunpack.c.h.b16 %v205
  %v1021 = vunpack.c.l.b16 %v206
  %v1022 = vunpack.c.h.b16 %v206
  %v1023 = vunpack.c.l.b16 %v207
  %v1024 = vunpack.c.h.b16 %v207
  %v1025 = vunpack.c.l.b16 %v208
  %v1026 = vunpack.c.h.b16 %v208
  %v1027 = vunpack.c.l.b16 %v209
  %v1028 = vunpack.c.h.b16 %v209
  %v1029 = vunpack.c.l.b16 %v210
  %v1030 = vunpack.c.h.b16 %v210
  %v1031 = vunpack.c.l.b16 %v211
  %v1032 = vunpack.c.h.b16 %v211
  %v1033 = vunpack.c.l.b16 %v212
  %v1034 = vunpack.c.h.b16 %v212
  %v1035 = vunpack.c.l.b16 %v213
  %v1036 = vunpack.c.h.b16 %v213
  %v1037 = vunpack.c.l.b16 %v214
  %v1038 = vunpack.c.h.b16 %v214
  %v1039 = vunpack.c.l.b16 %v215
  %v1040 = vunpack.c.h.b16 %v215
  %v1041 = vunpack.c.l.b16 %v216
  %v1042 = vunpack.c.h.b16 %v216
  %v1043 = vunpack.c.l.b16 %v217
  %v1044 = vunpack.c.h.b16 %v217
  %v1045 = vunpack.c.l.b16 %v218
  %v1046 = vunpack.c.h.b16 %v218
  %v1047 = vunpack.c.l.b16 %v219
  %v1048 = vunpack.c.h.b16 %v219
  %v1049 = vunpack.c.l.b16 %v220
  %v1050 = vunpack.c.h.b16 %v220
  %v1051 = vunpack.c.l.b16 %v221
  %v1052 = vunpack.c.h.b16 %v221
  %v1053 = vunpack.c.l.b16 %v222
  %v1054 = vunpack.c.h.b16 %v222
  %v1055 = vunpack.c.l.b16 %v223
  %v1056 = vunpack.c.h.b16 %v223
  %v1057 = vunpack.c.l.b16 %v224
  %v1058 = vunpack.c.h.b16 %v224
  %v1059 = vunpack.c.l.b16 %v225
  %v1060 = vunpack.c.h.b16 %v225
  %v1061 = vunpack.c.l.b16 %v226
  %v1062 = vunpack.c.h.b16 %v226
  %v1063 = vunpack.c.l.b16 %v227
  %v1064 = vunpack.c.h.b16 %v227
  %v1065 = vunpack.c.l.b16 %v228
  %v1066 = vunpack.c.h.b16 %v228
  %v1067 = vunpack.c.l.b16 %v229
  %v1068 = vunpack.c.h.b16 %v229
  %v1069 = vunpack.c.l.b16 %v230
  %v1070 = vunpack.c.h.b16 %v230
  %v1071 = vunpack.c.l.b16 %v231
  %v1072 = vunpack.c.h.b16 %v231
  %v1073 = vunpack.c.l.b16 %v232
  %v1074 = vunpack.c.h.b16 %v232
  %v1075 = vunpack.c.l.b16 %v233
  %v1076 = vunpack.c.h.b16 %v233
  %v1077 = vunpack.c.l.b16 %v234
  %v1078 = vunpack.c.h.b16 %v234
  %v1079 = vunpack.c.l.b16 %v235
  %v1080 = vunpack.c.h.b16 %v235
  %v1081 = vunpack.c.l.b16 %v236
  %v1082 = vunpack.c.h.b16 %v236
  %v1083 = vunpack.c.l.b16 %v237
  %v1084 = vunpack.c.h.b16 %v237
  %v1085 = vunpack.c.l.b16 %v238
  %v1086 = vunpack.c.h.b16 %v238
  %v1087 = vunpack.c.l.b16 %v239
  %v1088 = vunpack.c.h.b16 %v239
  %v1089 = vunpack.c.l.b16 %v240
  %v1090 = vunpack.c.h.b16 %v240
  %v1091 = vunpack.c.l.b16 %v241
  %v1092 = vunpack.c.h.b16 %v241
  %v1093 = vunpack.c.l.b16 %v242
  %v1094 = vunpack.c.h.b16 %v242
  %v1095 = vunpack.c.l.b16 %v243
  %v1096 = vunpack.c.h.b16 %v243
  %v1097 = vunpack.c.l.b16 %v244
  %v1098 = vunpack.c.h.b16 %v244
  %v1099 = vunpack.c.l.b16 %v245
  %v1100 = vunpack.c.h.b16 %v245
  %v1101 = vunpack.c.l.b16 %v246
  %v1102 = vunpack.c.h.b16 %v246
  %v1103 = vunpack.c.l.b16 %v247
  %v1104 = vunpack.c.h.b16 %v247
  %v1105 = vunpack.c.l.b16 %v248
  %v1106 = vunpack.c.h.b16 %v248
  %v1107 = vunpack.c.l.b16 %v249
  %v1108 = vunpack.c.h.b16 %v249
  %v1109 = vunpack.c.l.b16 %v250
  %v1110 = vunpack.c.h.b16 %v250
  %v1111 = vunpack.c.l.b16 %v251
  %v1112 = vunpack.c.h.b16 %v251
  %v1113 = vunpack.c.l.b16 %v252
  %v1114 = vunpack.c.h.b16 %v252
  %v1115 = vunpack.c.l.b16 %v253
  %v1116 = vunpack.c.h.b16 %v253
  %v1117 = vunpack.c.l.b16 %v254
  %v1118 = vunpack.c.h.b16 %v254
  %v1119 = vunpack.c.l.b16 %v255
  %v1120 = vunpack.c.h.b16 %v255
  %v1121 = vunpack.c.l.b16 %v256
  %v1122 = vunpack.c.h.b16 %v256
  %v1123 = vunpack.c.l.b16 %v257
  %v1124 = vunpack.c.h.b16 %v257
  %v1125 = vunpack.c.l.b16 %v258
  %v1126 = vunpack.c.h.b16 %v258
  %v1127 = vunpack.c.l.b16 %v259
  %v1128 = vunpack.c.h.b16 %v259
  %v1129 = vunpack.c.l.b16 %v260
  %v1130 = vunpack.c.h.b16 %v260
  %v1131 = vunpack.c.l.b16 %v261
  %v1132 = vunpack.c.h.b16 %v261
  %v1133 = vunpack.c.l.b16 %v262
  %v1134 = vunpack.c.h.b16 %v262
  %v1135 = vunpack.c.l.b16 %v263
  %v1136 = vunpack.c.h.b16 %v263
  %v1137 = vunpack.c.l.b16 %v264
  %v1138 = vunpack.c.h.b16 %v264
  %v1139 = vunpack.c.l.b16 %v265
  %v1140 = vunpack.c.h.b16 %v265
  %v1141 = vunpack.c.l.b16 %v266
  %v1142 = vunpack.c.h.b16 %v266
  %v1143 = vunpack.c.l.b16 %v267
  %v1144 = vunpack.c.h.b16 %v267
  %v1145 = vunpack.c.l.b16 %v268
  %v1146 = vunpack.c.h.b16 %v268
  %v1147 = vunpack.c.l.b16 %v269
  %v1148 = vunpack.c.h.b16 %v269
  %v1149 = vunpack.c.l.b16 %v270
  %v1150 = vunpack.c.h.b16 %v270
  %v1151 = vunpack.c.l.b16 %v271
  %v1152 = vunpack.c.h.b16 %v271
  %v1153 = vunpack.c.l.b16 %v272
  %v1154 = vunpack.c.h.b16 %v272
  %v1155 = vunpack.c.l.b16 %v273
  %v1156 = vunpack.c.h.b16 %v273
  %v1157 = vunpack.c.l.b16 %v274
  %v1158 = vunpack.c.h.b16 %v274
  %v1159 = vunpack.c.l.b16 %v275
  %v1160 = vunpack.c.h.b16 %v275
  %v1161 = vunpack.c.l.b16 %v276
  %v1162 = vunpack.c.h.b16 %v276
  %v1163 = vunpack.c.l.b16 %v277
  %v1164 = vunpack.c.h.b16 %v277
  %v1165 = vunpack.c.l.b16 %v278
  %v1166 = vunpack.c.h.b16 %v278
  %v1167 = vunpack.c.l.b16 %v279
  %v1168 = vunpack.c.h.b16 %v279
  %v1169 = vunpack.c.l.b16 %v280
  %v1170 = vunpack.c.h.b16 %v280
  %v1171 = vpack.c.b16 %v783, %v779
  %v1172 = vpack.c.b16 %v784, %v780
  %v1173 = vpack.c.b16 %v785, %v781
  %v1174 = vpack.c.b16 %v786, %v782
  %v1175 = vpack.c.b16 %v791, %v787
  %v1176 = vpack.c.b16 %v792, %v788
  %v1177 = vpack.c.b16 %v793, %v789
  %v1178 = vpack.c.b16 %v794, %v790
  %v1179 = vpack.c.b16 %v799, %v795
  %v1180 = vpack.c.b16 %v800, %v796
  %v1181 = vpack.c.b16 %v801, %v797
  %v1182 = vpack.c.b16 %v802, %v798
  %v1183 = vpack.c.b16 %v807, %v803
  %v1184 = vpack.c.b16 %v808, %v804
  %v1185 = vpack.c.b16 %v809, %v805
  %v1186 = vpack.c.b16 %v810, %v806
  %v1187 = vpack.c.b16 %v815, %v811
  %v1188 = vpack.c.b16 %v816, %v812
  %v1189 = vpack.c.b16 %v817, %v813
  %v1190 = vpack.c.b16 %v818, %v814
  %v1191 = vpack.c.b16 %v823, %v819
  %v1192 = vpack.c.b16 %v824, %v820
  %v1193 = vpack.c.b16 %v825, %v821
  %v1194 = vpack.c.b16 %v826, %v822
  %v1195 = vpack.c.b16 %v831, %v827
  %v1196 = vpack.c.b16 %v832, %v828
  %v1197 = vpack.c.b16 %v833, %v829
  %v1198 = vpack.c.b16 %v834, %v830
  %v1199 = vpack.c.b16 %v839, %v835
  %v1200 = vpack.c.b16 %v840, %v836
  %v1201 = vpack.c.b16 %v841, %v837
  %v1202 = vpack.c.b16 %v842, %v838
  %v1203 = vpack.c.b16 %v847, %v843
  %v1204 = vpack.c.b16 %v848, %v844
  %v1205 = vpack.c.b16 %v849, %v845
  %v1206 = vpack.c.b16 %v850, %v846
  %v1207 = vpack.c.b16 %v855, %v851
  %v1208 = vpack.c.b16 %v856, %v852
  %v1209 = vpack.c.b16 %v857, %v853
  %v1210 = vpack.c.b16 %v858, %v854
  %v1211 = vpack.c.b16 %v863, %v859
  %v1212 = vpack.c.b16 %v864, %v860
  %v1213 = vpack.c.b16 %v865, %v861
  %v1214 = vpack.c.b16 %v866, %v862
  %v1215 = vpack.c.b16 %v871, %v867
  %v1216 = vpack.c.b16 %v872, %v868
  %v1217 = vpack.c.b16 %v873, %v869
  %v1218 = vpack.c.b16 %v874, %v870
  %v1219 = vpack.c.b16 %v879, %v875
  %v1220 = vpack.c.b16 %v880, %v876
  %v1221 = vpack.c.b16 %v881, %v877
  %v1222 = vpack.c.b16 %v882, %v878
  %v1223 = vpack.c.b16 %v887, %v883
  %v1224 = vpack.c.b16 %v888, %v884
  %v1225 = vpack.c.b16 %v889, %v885
  %v1226 = vpack.c.b16 %v890, %v886
  %v1227 = vpack.c.b16 %v895, %v891
  %v1228 = vpack.c.b16 %v896, %v892
  %v1229 = vpack.c.b16 %v897, %v893
  %v1230 = vpack.c.b16 %v898, %v894
  %v1231 = vpack.c.b16 %v903, %v899
  %v1232 = vpack.c.b16 %v904, %v900
  %v1233 = vpack.c.b16 %v905, %v901
  %v1234 = vpack.c.b16 %v906, %v902
  %v1235 = vpack.c.b16 %v911, %v907
  %v1236 = vpack.c.b16 %v912, %v908
  %v1237 = vpack.c.b16 %v913, %v909
  %v1238 = vpack.c.b16 %v914, %v910
  %v1239 = vpack.c.b16 %v919, %v915
  %v1240 = vpack.c.b16 %v920, %v916
  %v1241 = vpack.c.b16 %v921, %v917
  %v1242 = vpack.c.b16 %v922, %v918
  %v1243 = vpack.c.b16 %v927, %v923
  %v1244 = vpack.c.b16 %v928, %v924
  %v1245 = vpack.c.b16 %v929, %v925
  %v1246 = vpack.c.b16 %v930, %v926
  %v1247 = vpack.c.b16 %v935, %v931
  %v1248 = vpack.c.b16 %v936, %v932
  %v1249 = vpack.c.b16 %v937, %v933
  %v1250 = vpack.c.b16 %v938, %v934
  %v1251 = vpack.c.b16 %v943, %v939
  %v1252 = vpack.c.b16 %v944, %v940
  %v1253 = vpack.c.b16 %v945, %v941
  %v1254 = vpack.c.b16 %v946, %v942
  %v1255 = vpack.c.b16 %v951, %v947
  %v1256 = vpack.c.b16 %v952, %v948
  %v1257 = vpack.c.b16 %v953, %v949
  %v1258 = vpack.c.b16 %v954, %v950
  %v1259 = vpack.c.b16 %v959, %v955
  %v1260 = vpack.c.b16 %v960, %v956
  %v1261 = vpack.c.b16 %v961, %v957
  %v1262 = vpack.c.b16 %v962, %v958
  %v1263 = vpack.c.b16 %v967, %v963
  %v1264 = vpack.c.b16 %v968, %v964
  %v1265 = vpack.c.b16 %v969, %v965
  %v1266 = vpack.c.b16 %v970, %v966
  %v1267 = vpack.c.b16 %v975, %v971
  %v1268 = vpack.c.b16 %v976, %v972
  %v1269 = vpack.c.b16 %v977, %v973
  %v1270 = vpack.c.b16 %v978, %v974
  %v1271 = vpack.c.b16 %v983, %v979
  %v1272 = vpack.c.b16 %v984, %v980
  %v1273 = vpack.c.b16 %v985, %v981
  %v1274 = vpack.c.b16 %v986, %v982
  %v1275 = vpack.c.b16 %v991, %v987
  %v1276 = vpack.c.b16 %v992, %v988
  %v1277 = vpack.c.b16 %v993, %v989
  %v1278 = vpack.c.b16 %v994, %v990
  %v1279 = vpack.c.b16 %v999, %v995
  %v1280 = vpack.c.b16 %v1000, %v996
  %v1281 = vpack.c.b16 %v1001, %v997
  %v1282 = vpack.c.b16 %v1002, %v998
  %v1283 = vpack.c.b16 %v1007, %v1003
  %v1284 = vpack.c.b16 %v1008, %v1004
  %v1285 = vpack.c.b16 %v1009, %v1005
  %v1286 = vpack.c.b16 %v1010, %v1006
  %v1287 = vpack.c.b16 %v1015, %v1011
  %v1288 = vpack.c.b16 %v1016, %v1012
  %v1289 = vpack.c.b16 %v1017, %v1013
  %v1290 = vpack.c.b16 %v1018, %v1014
  %v1291 = vpack.c.b16 %v1023, %v1019
  %v1292 = vpack.c.b16 %v1024, %v1020
  %v1293 = vpack.c.b16 %v1025, %v1021
  %v1294 = vpack.c.b16 %v1026, %v1022
  %v1295 = vpack.c.b16 %v1031, %v1027
  %v1296 = vpack.c.b16 %v1032, %v1028
  %v1297 = vpack.c.b16 %v1033, %v1029
  %v1298 = vpack.c.b16 %v1034, %v1030
  %v1299 = vpack.c.b16 %v1039, %v1035
  %v1300 = vpack.c.b16 %v1040, %v1036
  %v1301 = vpack.c.b16 %v1041, %v1037
  %v1302 = vpack.c.b16 %v1042, %v1038
  %v1303 = vpack.c.b16 %v1047, %v1043
  %v1304 = vpack.c.b16 %v1048, %v1044
  %v1305 = vpack.c.b16 %v1049, %v1045
  %v1306 = vpack.c.b16 %v1050, %v1046
  %v1307 = vpack.c.b16 %v1055, %v1051
  %v1308 = vpack.c.b16 %v1056, %v1052
  %v1309 = vpack.c.b16 %v1057, %v1053
  %v1310 = vpack.c.b16 %v1058, %v1054
  %v1311 = vpack.c.b16 %v1063, %v1059
  %v1312 = vpack.c.b16 %v1064, %v1060
  %v1313 = vpack.c.b16 %v1065, %v1061
  %v1314 = vpack.c.b16 %v1066, %v1062
  %v1315 = vpack.c.b16 %v1071, %v1067
  %v1316 = vpack.c.b16 %v1072, %v1068
  %v1317 = vpack.c.b16 %v1073, %v1069
  %v1318 = vpack.c.b16 %v1074, %v1070
  %v1319 = vpack.c.b16 %v1079, %v1075
  %v1320 = vpack.c.b16 %v1080, %v1076
  %v1321 = vpack.c.b16 %v1081, %v1077
  %v1322 = vpack.c.b16 %v1082, %v1078
  %v1323 = vpack.c.b16 %v1087, %v1083
  %v1324 = vpack.c.b16 %v1088, %v1084
  %v1325 = vpack.c.b16 %v1089, %v1085
  %v1326 = vpack.c.b16 %v1090, %v1086
  %v1327 = vpack.c.b16 %v1095, %v1091
  %v1328 = vpack.c.b16 %v1096, %v1092
  %v1329 = vpack.c.b16 %v1097, %v1093
  %v1330 = vpack.c.b16 %v1098, %v1094
  %v1331 = vpack.c.b16 %v1103, %v1099
  %v1332 = vpack.c.b16 %v1104, %v1100
  %v1333 = vpack.c.b16 %v1105, %v1101
  %v1334 = vpack.c.b16 %v1106, %v1102
  %v1335 = vpack.c.b16 %v1111, %v1107
  %v1336 = vpack.c.b16 %v1112, %v1108
  %v1337 = vpack.c.b16 %v1113, %v1109
  %v1338 = vpack.c.b16 %v1114, %v1110
  %v1339 = vpack.c.b16 %v1119, %v1115
  %v1340 = vpack.c.b16 %v1120, %v1116
  %v1341 = vpack.c.b16 %v1121, %v1117
  %v1342 = vpack.c.b16 %v1122, %v1118
  %v1343 = vpack.c.b16 %v1127, %v1123
  %v1344 = vpack.c.b16 %v1128, %v1124
  %v1345 = vpack.c.b16 %v1129, %v1125
  %v1346 = vpack.c.b16 %v1130, %v1126
  %v1347 = vpack.c.b16 %v1135, %v1131
  %v1348 = vpack.c.b16 %v1136, %v1132
  %v1349 = vpack.c.b16 %v1137, %v1133
  %v1350 = vpack.c.b16 %v1138, %v1134
  %v1351 = vpack.c.b16 %v1143, %v1139
  %v1352 = vpack.c.b16 %v1144, %v1140
  %v1353 = vpack.c.b16 %v1145, %v1141
  %v1354 = vpack.c.b16 %v1146, %v1142
  %v1355 = vpack.c.b16 %v1151, %v1147
  %v1356 = vpack.c.b16 %v1152, %v1148
  %v1357 = vpack.c.b16 %v1153, %v1149
  %v1358 = vpack.c.b16 %v1154, %v1150
  %v1359 = vpack.c.b16 %v1159, %v1155
  %v1360 = vpack.c.b16 %v1160, %v1156
  %v1361 = vpack.c.b16 %v1161, %v1157
  %v1362 = vpack.c.b16 %v1162, %v1158
  %v1363 = vpack.c.b16 %v1167, %v1163
  %v1364 = vpack.c.b16 %v1168, %v1164
  %v1365 = vpack.c.b16 %v1169, %v1165
  %v1366 = vpack.c.b16 %v1170, %v1166
  %vm1563 = vcmask 130048
  %v1565 = vsel %vm1563, %v485, 0
  %v1568 = vsel %vm1563, %v492, 0
  %v1571 = vsel %vm1563, %v499, 0
  %v1574 = vsel %vm1563, %v506, 0
  %v1577 = vsel %vm1563, %v513, 0
  %v1580 = vsel %vm1563, %v520, 0
  %v1583 = vsel %vm1563, %v527, 0
  %v1586 = vsel %vm1563, %v534, 0
  %1588 = vmatprep.subr.bf16.mxu0 %v1172
  %1589 = vmatpush1.bf16.msra.mxu0 %v1171
  %1590 = vmatprep.subr.bf16.mxu0 %v1176
  %1591 = vmatpush1.bf16.msra.mxu0 %v1175
  %1592 = vmatprep.subr.bf16.mxu0 %v1180
  %1593 = vmatpush1.bf16.msra.mxu0 %v1179
  %1594 = vmatprep.subr.bf16.mxu0 %v1184
  %1595 = vmatpush1.bf16.msra.mxu0 %v1183
  %1596 = vmatprep.subr.bf16.mxu0 %v1188
  %1597 = vmatpush1.bf16.msra.mxu0 %v1187
  %1598 = vmatprep.subr.bf16.mxu0 %v1192
  %1599 = vmatpush1.bf16.msra.mxu0 %v1191
  %1600 = vmatprep.subr.bf16.mxu0 %v1196
  %1601 = vmatpush1.bf16.msra.mxu0 %v1195
  %1602 = vmatprep.subr.bf16.mxu0 %v1200
  %1603 = vmatpush1.bf16.msra.mxu0 %v1199
  %1604 = vmatprep.subr.bf16.mxu0 %v1204
  %1605 = vmatpush1.bf16.msra.mxu0 %v1203
  %1606 = vmatprep.subr.bf16.mxu0 %v1208
  %1607 = vmatpush1.bf16.msra.mxu0 %v1207
  %1608 = vmatprep.subr.bf16.mxu0 %v1212
  %1609 = vmatpush1.bf16.msra.mxu0 %v1211
  %1610 = vmatprep.subr.bf16.mxu0 %v1216
  %1611 = vmatpush1.bf16.msra.mxu0 %v1215
  %1612 = vmatprep.subr.bf16.mxu0 %v1220
  %1613 = vmatpush1.bf16.msra.mxu0 %v1219
  %1614 = vmatprep.subr.bf16.mxu0 %v1224
  %1615 = vmatpush1.bf16.msra.mxu0 %v1223
  %1616 = vmatprep.subr.bf16.mxu0 %v1228
  %1617 = vmatpush1.bf16.msra.mxu0 %v1227
  %1618 = vmatprep.subr.bf16.mxu0 %v1232
  %1619 = vmatpush1.bf16.msra.mxu0 %v1231
  %1620 = vmatprep.mubr.bf16.mxu0 %v480
  %1621 = vmatmul.mubr.bf16.gmra.mrb[0].mxu0 %v479
  %v1622 = vpop.f32.mrb[0].mxu0
  %v1623 = vadd.f32 %v286, %v1622
  %v1624 = vpop.f32.mrb[0].mxu0
  %v1625 = vadd.f32 %v290, %v1624
  %v1626 = vpop.f32.mrb[0].mxu0
  %v1627 = vadd.f32 %v286, %v1626
  %v1628 = vpop.f32.mrb[0].mxu0
  %v1629 = vadd.f32 %v290, %v1628
  %1630 = vmatprep.mubr.bf16.mxu0 %v487
  %1631 = vmatmul.mubr.bf16.gmra.mrb[0].mxu0 %v486
  %v1632 = vpop.f32.mrb[0].mxu0
  %v1633 = vadd.f32 %v286, %v1632
  %v1634 = vpop.f32.mrb[0].mxu0
  %v1635 = vadd.f32 %v290, %v1634
  %v1636 = vpop.f32.mrb[0].mxu0
  %v1637 = vadd.f32 %v286, %v1636
  %v1638 = vpop.f32.mrb[0].mxu0
  %v1639 = vadd.f32 %v290, %v1638
  %1640 = vmatprep.mubr.bf16.mxu0 %v494
  %1641 = vmatmul.mubr.bf16.gmra.mrb[0].mxu0 %v493
  %v1642 = vpop.f32.mrb[0].mxu0
  %v1643 = vadd.f32 %v286, %v1642
  %v1644 = vpop.f32.mrb[0].mxu0
  %v1645 = vadd.f32 %v290, %v1644
  %v1646 = vpop.f32.mrb[0].mxu0
  %v1647 = vadd.f32 %v286, %v1646
  %v1648 = vpop.f32.mrb[0].mxu0
  %v1649 = vadd.f32 %v290, %v1648
  %1650 = vmatprep.mubr.bf16.mxu0 %v501
  %1651 = vmatmul.mubr.bf16.gmra.mrb[0].mxu0 %v500
  %v1652 = vpop.f32.mrb[0].mxu0
  %v1653 = vadd.f32 %v286, %v1652
  %v1654 = vpop.f32.mrb[0].mxu0
  %v1655 = vadd.f32 %v290, %v1654
  %v1656 = vpop.f32.mrb[0].mxu0
  %v1657 = vadd.f32 %v286, %v1656
  %v1658 = vpop.f32.mrb[0].mxu0
  %v1659 = vadd.f32 %v290, %v1658
  %1660 = vmatprep.mubr.bf16.mxu0 %v508
  %1661 = vmatmul.mubr.bf16.gmra.mrb[0].mxu0 %v507
  %v1662 = vpop.f32.mrb[0].mxu0
  %v1663 = vadd.f32 %v286, %v1662
  %v1664 = vpop.f32.mrb[0].mxu0
  %v1665 = vadd.f32 %v290, %v1664
  %v1666 = vpop.f32.mrb[0].mxu0
  %v1667 = vadd.f32 %v286, %v1666
  %v1668 = vpop.f32.mrb[0].mxu0
  %v1669 = vadd.f32 %v290, %v1668
  %1670 = vmatprep.mubr.bf16.mxu0 %v515
  %1671 = vmatmul.mubr.bf16.gmra.mrb[0].mxu0 %v514
  %v1672 = vpop.f32.mrb[0].mxu0
  %v1673 = vadd.f32 %v286, %v1672
  %v1674 = vpop.f32.mrb[0].mxu0
  %v1675 = vadd.f32 %v290, %v1674
  %v1676 = vpop.f32.mrb[0].mxu0
  %v1677 = vadd.f32 %v286, %v1676
  %v1678 = vpop.f32.mrb[0].mxu0
  %v1679 = vadd.f32 %v290, %v1678
  %1680 = vmatprep.mubr.bf16.mxu0 %v522
  %1681 = vmatmul.mubr.bf16.gmra.mrb[0].mxu0 %v521
  %v1682 = vpop.f32.mrb[0].mxu0
  %v1683 = vadd.f32 %v286, %v1682
  %v1684 = vpop.f32.mrb[0].mxu0
  %v1685 = vadd.f32 %v290, %v1684
  %v1686 = vpop.f32.mrb[0].mxu0
  %v1687 = vadd.f32 %v286, %v1686
  %v1688 = vpop.f32.mrb[0].mxu0
  %v1689 = vadd.f32 %v290, %v1688
  %1690 = vmatprep.mubr.bf16.mxu0 %v529
  %1691 = vmatmul.mubr.bf16.gmra.mrb[0].mxu0 %v528
  %v1692 = vpop.f32.mrb[0].mxu0
  %v1693 = vadd.f32 %v286, %v1692
  %v1694 = vpop.f32.mrb[0].mxu0
  %v1695 = vadd.f32 %v290, %v1694
  %v1696 = vpop.f32.mrb[0].mxu0
  %v1697 = vadd.f32 %v286, %v1696
  %v1698 = vpop.f32.mrb[0].mxu0
  %v1699 = vadd.f32 %v290, %v1698
  %1700 = vdwg.mxu0
  %1701 = vmatprep.subr.bf16.mxu0 %v1236
  %1702 = vmatpush1.bf16.msra.mxu0 %v1235
  %1703 = vmatprep.subr.bf16.mxu0 %v1240
  %1704 = vmatpush1.bf16.msra.mxu0 %v1239
  %1705 = vmatprep.subr.bf16.mxu0 %v1244
  %1706 = vmatpush1.bf16.msra.mxu0 %v1243
  %1707 = vmatprep.subr.bf16.mxu0 %v1248
  %1708 = vmatpush1.bf16.msra.mxu0 %v1247
  %1709 = vmatprep.subr.bf16.mxu0 %v1252
  %1710 = vmatpush1.bf16.msra.mxu0 %v1251
  %1711 = vmatprep.subr.bf16.mxu0 %v1256
  %1712 = vmatpush1.bf16.msra.mxu0 %v1255
  %1713 = vmatprep.subr.bf16.mxu0 %v1260
  %1714 = vmatpush1.bf16.msra.mxu0 %v1259
  %1715 = vmatprep.subr.bf16.mxu0 %v1264
  %1716 = vmatpush1.bf16.msra.mxu0 %v1263
  %1717 = vmatprep.subr.bf16.mxu0 %v1268
  %1718 = vmatpush1.bf16.msra.mxu0 %v1267
  %1719 = vmatprep.subr.bf16.mxu0 %v1272
  %1720 = vmatpush1.bf16.msra.mxu0 %v1271
  %1721 = vmatprep.subr.bf16.mxu0 %v1276
  %1722 = vmatpush1.bf16.msra.mxu0 %v1275
  %1723 = vmatprep.subr.bf16.mxu0 %v1280
  %1724 = vmatpush1.bf16.msra.mxu0 %v1279
  %1725 = vmatprep.subr.bf16.mxu0 %v1284
  %1726 = vmatpush1.bf16.msra.mxu0 %v1283
  %1727 = vmatprep.subr.bf16.mxu0 %v1288
  %1728 = vmatpush1.bf16.msra.mxu0 %v1287
  %1729 = vmatprep.subr.bf16.mxu0 %v1292
  %1730 = vmatpush1.bf16.msra.mxu0 %v1291
  %1731 = vmatprep.subr.bf16.mxu0 %v1296
  %1732 = vmatpush1.bf16.msra.mxu0 %v1295
  %1733 = vmatprep.mubr.bf16.mxu0 %v482
  %1734 = vmatmul.mubr.bf16.gmra.mrb[0].mxu0 %v481
  %v1735 = vpop.f32.mrb[0].mxu0
  %v1736 = vadd.f32 %v1623, %v1735
  %v1737 = vpop.f32.mrb[0].mxu0
  %v1738 = vadd.f32 %v1625, %v1737
  %v1739 = vpop.f32.mrb[0].mxu0
  %v1740 = vadd.f32 %v1627, %v1739
  %v1741 = vpop.f32.mrb[0].mxu0
  %v1742 = vadd.f32 %v1629, %v1741
  %1743 = vmatprep.mubr.bf16.mxu0 %v489
  %1744 = vmatmul.mubr.bf16.gmra.mrb[0].mxu0 %v488
  %v1745 = vpop.f32.mrb[0].mxu0
  %v1746 = vadd.f32 %v1633, %v1745
  %v1747 = vpop.f32.mrb[0].mxu0
  %v1748 = vadd.f32 %v1635, %v1747
  %v1749 = vpop.f32.mrb[0].mxu0
  %v1750 = vadd.f32 %v1637, %v1749
  %v1751 = vpop.f32.mrb[0].mxu0
  %v1752 = vadd.f32 %v1639, %v1751
  %1753 = vmatprep.mubr.bf16.mxu0 %v496
  %1754 = vmatmul.mubr.bf16.gmra.mrb[0].mxu0 %v495
  %v1755 = vpop.f32.mrb[0].mxu0
  %v1756 = vadd.f32 %v1643, %v1755
  %v1757 = vpop.f32.mrb[0].mxu0
  %v1758 = vadd.f32 %v1645, %v1757
  %v1759 = vpop.f32.mrb[0].mxu0
  %v1760 = vadd.f32 %v1647, %v1759
  %v1761 = vpop.f32.mrb[0].mxu0
  %v1762 = vadd.f32 %v1649, %v1761
  %1763 = vmatprep.mubr.bf16.mxu0 %v503
  %1764 = vmatmul.mubr.bf16.gmra.mrb[0].mxu0 %v502
  %v1765 = vpop.f32.mrb[0].mxu0
  %v1766 = vadd.f32 %v1653, %v1765
  %v1767 = vpop.f32.mrb[0].mxu0
  %v1768 = vadd.f32 %v1655, %v1767
  %v1769 = vpop.f32.mrb[0].mxu0
  %v1770 = vadd.f32 %v1657, %v1769
  %v1771 = vpop.f32.mrb[0].mxu0
  %v1772 = vadd.f32 %v1659, %v1771
  %1773 = vmatprep.mubr.bf16.mxu0 %v510
  %1774 = vmatmul.mubr.bf16.gmra.mrb[0].mxu0 %v509
  %v1775 = vpop.f32.mrb[0].mxu0
  %v1776 = vadd.f32 %v1663, %v1775
  %v1777 = vpop.f32.mrb[0].mxu0
  %v1778 = vadd.f32 %v1665, %v1777
  %v1779 = vpop.f32.mrb[0].mxu0
  %v1780 = vadd.f32 %v1667, %v1779
  %v1781 = vpop.f32.mrb[0].mxu0
  %v1782 = vadd.f32 %v1669, %v1781
  %1783 = vmatprep.mubr.bf16.mxu0 %v517
  %1784 = vmatmul.mubr.bf16.gmra.mrb[0].mxu0 %v516
  %v1785 = vpop.f32.mrb[0].mxu0
  %v1786 = vadd.f32 %v1673, %v1785
  %v1787 = vpop.f32.mrb[0].mxu0
  %v1788 = vadd.f32 %v1675, %v1787
  %v1789 = vpop.f32.mrb[0].mxu0
  %v1790 = vadd.f32 %v1677, %v1789
  %v1791 = vpop.f32.mrb[0].mxu0
  %v1792 = vadd.f32 %v1679, %v1791
  %1793 = vmatprep.mubr.bf16.mxu0 %v524
  %1794 = vmatmul.mubr.bf16.gmra.mrb[0].mxu0 %v523
  %v1795 = vpop.f32.mrb[0].mxu0
  %v1796 = vadd.f32 %v1683, %v1795
  %v1797 = vpop.f32.mrb[0].mxu0
  %v1798 = vadd.f32 %v1685, %v1797
  %v1799 = vpop.f32.mrb[0].mxu0
  %v1800 = vadd.f32 %v1687, %v1799
  %v1801 = vpop.f32.mrb[0].mxu0
  %v1802 = vadd.f32 %v1689, %v1801
  %1803 = vmatprep.mubr.bf16.mxu0 %v531
  %1804 = vmatmul.mubr.bf16.gmra.mrb[0].mxu0 %v530
  %v1805 = vpop.f32.mrb[0].mxu0
  %v1806 = vadd.f32 %v1693, %v1805
  %v1807 = vpop.f32.mrb[0].mxu0
  %v1808 = vadd.f32 %v1695, %v1807
  %v1809 = vpop.f32.mrb[0].mxu0
  %v1810 = vadd.f32 %v1697, %v1809
  %v1811 = vpop.f32.mrb[0].mxu0
  %v1812 = vadd.f32 %v1699, %v1811
  %1813 = vdwg.mxu0
  %1814 = vmatprep.subr.bf16.mxu0 %v1300
  %1815 = vmatpush1.bf16.msra.mxu0 %v1299
  %1816 = vmatprep.subr.bf16.mxu0 %v1304
  %1817 = vmatpush1.bf16.msra.mxu0 %v1303
  %1818 = vmatprep.subr.bf16.mxu0 %v1308
  %1819 = vmatpush1.bf16.msra.mxu0 %v1307
  %1820 = vmatprep.subr.bf16.mxu0 %v1312
  %1821 = vmatpush1.bf16.msra.mxu0 %v1311
  %1822 = vmatprep.subr.bf16.mxu0 %v1316
  %1823 = vmatpush1.bf16.msra.mxu0 %v1315
  %1824 = vmatprep.subr.bf16.mxu0 %v1320
  %1825 = vmatpush1.bf16.msra.mxu0 %v1319
  %1826 = vmatprep.subr.bf16.mxu0 %v1324
  %1827 = vmatpush1.bf16.msra.mxu0 %v1323
  %1828 = vmatprep.subr.bf16.mxu0 %v1328
  %1829 = vmatpush1.bf16.msra.mxu0 %v1327
  %1830 = vmatprep.subr.bf16.mxu0 %v1332
  %1831 = vmatpush1.bf16.msra.mxu0 %v1331
  %1832 = vmatprep.subr.bf16.mxu0 %v1336
  %1833 = vmatpush1.bf16.msra.mxu0 %v1335
  %1834 = vmatprep.subr.bf16.mxu0 %v1340
  %1835 = vmatpush1.bf16.msra.mxu0 %v1339
  %1836 = vmatprep.subr.bf16.mxu0 %v1344
  %1837 = vmatpush1.bf16.msra.mxu0 %v1343
  %1838 = vmatprep.subr.bf16.mxu0 %v1348
  %1839 = vmatpush1.bf16.msra.mxu0 %v1347
  %1840 = vmatprep.subr.bf16.mxu0 %v1352
  %1841 = vmatpush1.bf16.msra.mxu0 %v1351
  %1842 = vmatprep.subr.bf16.mxu0 %v1356
  %1843 = vmatpush1.bf16.msra.mxu0 %v1355
  %1844 = vmatprep.subr.bf16.mxu0 %v1360
  %1845 = vmatpush1.bf16.msra.mxu0 %v1359
  %1846 = vmatprep.mubr.bf16.mxu0 %v484
  %1847 = vmatmul.mubr.bf16.gmra.mrb[0].mxu0 %v483
  %v1848 = vpop.f32.mrb[0].mxu0
  %v1849 = vadd.f32 %v1736, %v1848
  %v1850 = vpop.f32.mrb[0].mxu0
  %v1851 = vadd.f32 %v1738, %v1850
  %v1852 = vpop.f32.mrb[0].mxu0
  %v1853 = vadd.f32 %v1740, %v1852
  %v1854 = vpop.f32.mrb[0].mxu0
  %v1855 = vadd.f32 %v1742, %v1854
  %1856 = vmatprep.mubr.bf16.mxu0 %v491
  %1857 = vmatmul.mubr.bf16.gmra.mrb[0].mxu0 %v490
  %v1858 = vpop.f32.mrb[0].mxu0
  %v1859 = vadd.f32 %v1746, %v1858
  %v1860 = vpop.f32.mrb[0].mxu0
  %v1861 = vadd.f32 %v1748, %v1860
  %v1862 = vpop.f32.mrb[0].mxu0
  %v1863 = vadd.f32 %v1750, %v1862
  %v1864 = vpop.f32.mrb[0].mxu0
  %v1865 = vadd.f32 %v1752, %v1864
  %1866 = vmatprep.mubr.bf16.mxu0 %v498
  %1867 = vmatmul.mubr.bf16.gmra.mrb[0].mxu0 %v497
  %v1868 = vpop.f32.mrb[0].mxu0
  %v1869 = vadd.f32 %v1756, %v1868
  %v1870 = vpop.f32.mrb[0].mxu0
  %v1871 = vadd.f32 %v1758, %v1870
  %v1872 = vpop.f32.mrb[0].mxu0
  %v1873 = vadd.f32 %v1760, %v1872
  %v1874 = vpop.f32.mrb[0].mxu0
  %v1875 = vadd.f32 %v1762, %v1874
  %1876 = vmatprep.mubr.bf16.mxu0 %v505
  %1877 = vmatmul.mubr.bf16.gmra.mrb[0].mxu0 %v504
  %v1878 = vpop.f32.mrb[0].mxu0
  %v1879 = vadd.f32 %v1766, %v1878
  %v1880 = vpop.f32.mrb[0].mxu0
  %v1881 = vadd.f32 %v1768, %v1880
  %v1882 = vpop.f32.mrb[0].mxu0
  %v1883 = vadd.f32 %v1770, %v1882
  %v1884 = vpop.f32.mrb[0].mxu0
  %v1885 = vadd.f32 %v1772, %v1884
  %1886 = vmatprep.mubr.bf16.mxu0 %v512
  %1887 = vmatmul.mubr.bf16.gmra.mrb[0].mxu0 %v511
  %v1888 = vpop.f32.mrb[0].mxu0
  %v1889 = vadd.f32 %v1776, %v1888
  %v1890 = vpop.f32.mrb[0].mxu0
  %v1891 = vadd.f32 %v1778, %v1890
  %v1892 = vpop.f32.mrb[0].mxu0
  %v1893 = vadd.f32 %v1780, %v1892
  %v1894 = vpop.f32.mrb[0].mxu0
  %v1895 = vadd.f32 %v1782, %v1894
  %1896 = vmatprep.mubr.bf16.mxu0 %v519
  %1897 = vmatmul.mubr.bf16.gmra.mrb[0].mxu0 %v518
  %v1898 = vpop.f32.mrb[0].mxu0
  %v1899 = vadd.f32 %v1786, %v1898
  %v1900 = vpop.f32.mrb[0].mxu0
  %v1901 = vadd.f32 %v1788, %v1900
  %v1902 = vpop.f32.mrb[0].mxu0
  %v1903 = vadd.f32 %v1790, %v1902
  %v1904 = vpop.f32.mrb[0].mxu0
  %v1905 = vadd.f32 %v1792, %v1904
  %1906 = vmatprep.mubr.bf16.mxu0 %v526
  %1907 = vmatmul.mubr.bf16.gmra.mrb[0].mxu0 %v525
  %v1908 = vpop.f32.mrb[0].mxu0
  %v1909 = vadd.f32 %v1796, %v1908
  %v1910 = vpop.f32.mrb[0].mxu0
  %v1911 = vadd.f32 %v1798, %v1910
  %v1912 = vpop.f32.mrb[0].mxu0
  %v1913 = vadd.f32 %v1800, %v1912
  %v1914 = vpop.f32.mrb[0].mxu0
  %v1915 = vadd.f32 %v1802, %v1914
  %1916 = vmatprep.mubr.bf16.mxu0 %v533
  %1917 = vmatmul.mubr.bf16.gmra.mrb[0].mxu0 %v532
  %v1918 = vpop.f32.mrb[0].mxu0
  %v1919 = vadd.f32 %v1806, %v1918
  %v1920 = vpop.f32.mrb[0].mxu0
  %v1921 = vadd.f32 %v1808, %v1920
  %v1922 = vpop.f32.mrb[0].mxu0
  %v1923 = vadd.f32 %v1810, %v1922
  %v1924 = vpop.f32.mrb[0].mxu0
  %v1925 = vadd.f32 %v1812, %v1924
  %1926 = vdwg.mxu0
  %1927 = vmatprep.subr.bf16.mxu0 %v1364
  %1928 = vmatpush1.bf16.msra.mxu0 %v1363
  %1929 = vmatprep.subr.bf16.mxu0 0
  %1930 = vmatpush1.bf16.msra.mxu0 0
  %1931 = vmatprep.subr.bf16.mxu0 0
  %1932 = vmatpush1.bf16.msra.mxu0 0
  %1933 = vmatprep.subr.bf16.mxu0 0
  %1934 = vmatpush1.bf16.msra.mxu0 0
  %1935 = vmatprep.subr.bf16.mxu0 0
  %1936 = vmatpush1.bf16.msra.mxu0 0
  %1937 = vmatprep.subr.bf16.mxu0 0
  %1938 = vmatpush1.bf16.msra.mxu0 0
  %1939 = vmatprep.subr.bf16.mxu0 0
  %1940 = vmatpush1.bf16.msra.mxu0 0
  %1941 = vmatprep.subr.bf16.mxu0 0
  %1942 = vmatpush1.bf16.msra.mxu0 0
  %1943 = vmatprep.subr.bf16.mxu0 0
  %1944 = vmatpush1.bf16.msra.mxu0 0
  %1945 = vmatprep.subr.bf16.mxu0 0
  %1946 = vmatpush1.bf16.msra.mxu0 0
  %1947 = vmatprep.subr.bf16.mxu0 0
  %1948 = vmatpush1.bf16.msra.mxu0 0
  %1949 = vmatprep.subr.bf16.mxu0 0
  %1950 = vmatpush1.bf16.msra.mxu0 0
  %1951 = vmatprep.subr.bf16.mxu0 0
  %1952 = vmatpush1.bf16.msra.mxu0 0
  %1953 = vmatprep.subr.bf16.mxu0 0
  %1954 = vmatpush1.bf16.msra.mxu0 0
  %1955 = vmatprep.subr.bf16.mxu0 0
  %1956 = vmatpush1.bf16.msra.mxu0 0
  %1957 = vmatprep.subr.bf16.mxu0 0
  %1958 = vmatpush1.bf16.msra.mxu0 0
  %1959 = vmatprep.mubr.bf16.mxu0 0
  %1960 = vmatmul.mubr.bf16.gmra.mrb[0].mxu0 %v1565
  %v1961 = vpop.f32.mrb[0].mxu0
  %v1962 = vadd.f32 %v1849, %v1961
  %v1963 = vpop.f32.mrb[0].mxu0
  %v1964 = vadd.f32 %v1851, %v1963
  %v1965 = vpop.f32.mrb[0].mxu0
  %v1966 = vadd.f32 %v1853, %v1965
  %v1967 = vpop.f32.mrb[0].mxu0
  %v1968 = vadd.f32 %v1855, %v1967
  %1969 = vmatprep.mubr.bf16.mxu0 0
  %1970 = vmatmul.mubr.bf16.gmra.mrb[0].mxu0 %v1568
  %v1971 = vpop.f32.mrb[0].mxu0
  %v1972 = vadd.f32 %v1859, %v1971
  %v1973 = vpop.f32.mrb[0].mxu0
  %v1974 = vadd.f32 %v1861, %v1973
  %v1975 = vpop.f32.mrb[0].mxu0
  %v1976 = vadd.f32 %v1863, %v1975
  %v1977 = vpop.f32.mrb[0].mxu0
  %v1978 = vadd.f32 %v1865, %v1977
  %1979 = vmatprep.mubr.bf16.mxu0 0
  %1980 = vmatmul.mubr.bf16.gmra.mrb[0].mxu0 %v1571
  %v1981 = vpop.f32.mrb[0].mxu0
  %v1982 = vadd.f32 %v1869, %v1981
  %v1983 = vpop.f32.mrb[0].mxu0
  %v1984 = vadd.f32 %v1871, %v1983
  %v1985 = vpop.f32.mrb[0].mxu0
  %v1986 = vadd.f32 %v1873, %v1985
  %v1987 = vpop.f32.mrb[0].mxu0
  %v1988 = vadd.f32 %v1875, %v1987
  %1989 = vmatprep.mubr.bf16.mxu0 0
  %1990 = vmatmul.mubr.bf16.gmra.mrb[0].mxu0 %v1574
  %v1991 = vpop.f32.mrb[0].mxu0
  %v1992 = vadd.f32 %v1879, %v1991
  %v1993 = vpop.f32.mrb[0].mxu0
  %v1994 = vadd.f32 %v1881, %v1993
  %v1995 = vpop.f32.mrb[0].mxu0
  %v1996 = vadd.f32 %v1883, %v1995
  %v1997 = vpop.f32.mrb[0].mxu0
  %v1998 = vadd.f32 %v1885, %v1997
  %1999 = vmatprep.mubr.bf16.mxu0 0
  %2000 = vmatmul.mubr.bf16.gmra.mrb[0].mxu0 %v1577
  %v2001 = vpop.f32.mrb[0].mxu0
  %v2002 = vadd.f32 %v1889, %v2001
  %v2003 = vpop.f32.mrb[0].mxu0
  %v2004 = vadd.f32 %v1891, %v2003
  %v2005 = vpop.f32.mrb[0].mxu0
  %v2006 = vadd.f32 %v1893, %v2005
  %v2007 = vpop.f32.mrb[0].mxu0
  %v2008 = vadd.f32 %v1895, %v2007
  %2009 = vmatprep.mubr.bf16.mxu0 0
  %2010 = vmatmul.mubr.bf16.gmra.mrb[0].mxu0 %v1580
  %v2011 = vpop.f32.mrb[0].mxu0
  %v2012 = vadd.f32 %v1899, %v2011
  %v2013 = vpop.f32.mrb[0].mxu0
  %v2014 = vadd.f32 %v1901, %v2013
  %v2015 = vpop.f32.mrb[0].mxu0
  %v2016 = vadd.f32 %v1903, %v2015
  %v2017 = vpop.f32.mrb[0].mxu0
  %v2018 = vadd.f32 %v1905, %v2017
  %2019 = vmatprep.mubr.bf16.mxu0 0
  %2020 = vmatmul.mubr.bf16.gmra.mrb[0].mxu0 %v1583
  %v2021 = vpop.f32.mrb[0].mxu0
  %v2022 = vadd.f32 %v1909, %v2021
  %v2023 = vpop.f32.mrb[0].mxu0
  %v2024 = vadd.f32 %v1911, %v2023
  %v2025 = vpop.f32.mrb[0].mxu0
  %v2026 = vadd.f32 %v1913, %v2025
  %v2027 = vpop.f32.mrb[0].mxu0
  %v2028 = vadd.f32 %v1915, %v2027
  %2029 = vmatprep.mubr.bf16.mxu0 0
  %2030 = vmatmul.mubr.bf16.gmra.mrb[0].mxu0 %v1586
  %v2031 = vpop.f32.mrb[0].mxu0
  %v2032 = vadd.f32 %v1919, %v2031
  %v2033 = vpop.f32.mrb[0].mxu0
  %v2034 = vadd.f32 %v1921, %v2033
  %v2035 = vpop.f32.mrb[0].mxu0
  %v2036 = vadd.f32 %v1923, %v2035
  %v2037 = vpop.f32.mrb[0].mxu0
  %v2038 = vadd.f32 %v1925, %v2037
  %2039 = vdwg.mxu0
  %2040 = vmatprep.subr.bf16.mxu0 %v1174
  %2041 = vmatpush1.bf16.msra.mxu0 %v1173
  %2042 = vmatprep.subr.bf16.mxu0 %v1178
  %2043 = vmatpush1.bf16.msra.mxu0 %v1177
  %2044 = vmatprep.subr.bf16.mxu0 %v1182
  %2045 = vmatpush1.bf16.msra.mxu0 %v1181
  %2046 = vmatprep.subr.bf16.mxu0 %v1186
  %2047 = vmatpush1.bf16.msra.mxu0 %v1185
  %2048 = vmatprep.subr.bf16.mxu0 %v1190
  %2049 = vmatpush1.bf16.msra.mxu0 %v1189
  %2050 = vmatprep.subr.bf16.mxu0 %v1194
  %2051 = vmatpush1.bf16.msra.mxu0 %v1193
  %2052 = vmatprep.subr.bf16.mxu0 %v1198
  %2053 = vmatpush1.bf16.msra.mxu0 %v1197
  %2054 = vmatprep.subr.bf16.mxu0 %v1202
  %2055 = vmatpush1.bf16.msra.mxu0 %v1201
  %2056 = vmatprep.subr.bf16.mxu0 %v1206
  %2057 = vmatpush1.bf16.msra.mxu0 %v1205
  %2058 = vmatprep.subr.bf16.mxu0 %v1210
  %2059 = vmatpush1.bf16.msra.mxu0 %v1209
  %2060 = vmatprep.subr.bf16.mxu0 %v1214
  %2061 = vmatpush1.bf16.msra.mxu0 %v1213
  %2062 = vmatprep.subr.bf16.mxu0 %v1218
  %2063 = vmatpush1.bf16.msra.mxu0 %v1217
  %2064 = vmatprep.subr.bf16.mxu0 %v1222
  %2065 = vmatpush1.bf16.msra.mxu0 %v1221
  %2066 = vmatprep.subr.bf16.mxu0 %v1226
  %2067 = vmatpush1.bf16.msra.mxu0 %v1225
  %2068 = vmatprep.subr.bf16.mxu0 %v1230
  %2069 = vmatpush1.bf16.msra.mxu0 %v1229
  %2070 = vmatprep.subr.bf16.mxu0 %v1234
  %2071 = vmatpush1.bf16.msra.mxu0 %v1233
  %2072 = vmatprep.mubr.bf16.mxu0 %v480
  %2073 = vmatmul.mubr.bf16.gmra.mrb[0].mxu0 %v479
  %v2074 = vpop.f32.mrb[0].mxu0
  %v2075 = vadd.f32 %v294, %v2074
  %v2076 = vpop.f32.mrb[0].mxu0
  %v2077 = vadd.f32 %v298, %v2076
  %v2078 = vpop.f32.mrb[0].mxu0
  %v2079 = vadd.f32 %v294, %v2078
  %v2080 = vpop.f32.mrb[0].mxu0
  %v2081 = vadd.f32 %v298, %v2080
  %2082 = vmatprep.mubr.bf16.mxu0 %v487
  %2083 = vmatmul.mubr.bf16.gmra.mrb[0].mxu0 %v486
  %v2084 = vpop.f32.mrb[0].mxu0
  %v2085 = vadd.f32 %v294, %v2084
  %v2086 = vpop.f32.mrb[0].mxu0
  %v2087 = vadd.f32 %v298, %v2086
  %v2088 = vpop.f32.mrb[0].mxu0
  %v2089 = vadd.f32 %v294, %v2088
  %v2090 = vpop.f32.mrb[0].mxu0
  %v2091 = vadd.f32 %v298, %v2090
  %2092 = vmatprep.mubr.bf16.mxu0 %v494
  %2093 = vmatmul.mubr.bf16.gmra.mrb[0].mxu0 %v493
  %v2094 = vpop.f32.mrb[0].mxu0
  %v2095 = vadd.f32 %v294, %v2094
  %v2096 = vpop.f32.mrb[0].mxu0
  %v2097 = vadd.f32 %v298, %v2096
  %v2098 = vpop.f32.mrb[0].mxu0
  %v2099 = vadd.f32 %v294, %v2098
  %v2100 = vpop.f32.mrb[0].mxu0
  %v2101 = vadd.f32 %v298, %v2100
  %2102 = vmatprep.mubr.bf16.mxu0 %v501
  %2103 = vmatmul.mubr.bf16.gmra.mrb[0].mxu0 %v500
  %v2104 = vpop.f32.mrb[0].mxu0
  %v2105 = vadd.f32 %v294, %v2104
  %v2106 = vpop.f32.mrb[0].mxu0
  %v2107 = vadd.f32 %v298, %v2106
  %v2108 = vpop.f32.mrb[0].mxu0
  %v2109 = vadd.f32 %v294, %v2108
  %v2110 = vpop.f32.mrb[0].mxu0
  %v2111 = vadd.f32 %v298, %v2110
  %2112 = vmatprep.mubr.bf16.mxu0 %v508
  %2113 = vmatmul.mubr.bf16.gmra.mrb[0].mxu0 %v507
  %v2114 = vpop.f32.mrb[0].mxu0
  %v2115 = vadd.f32 %v294, %v2114
  %v2116 = vpop.f32.mrb[0].mxu0
  %v2117 = vadd.f32 %v298, %v2116
  %v2118 = vpop.f32.mrb[0].mxu0
  %v2119 = vadd.f32 %v294, %v2118
  %v2120 = vpop.f32.mrb[0].mxu0
  %v2121 = vadd.f32 %v298, %v2120
  %2122 = vmatprep.mubr.bf16.mxu0 %v515
  %2123 = vmatmul.mubr.bf16.gmra.mrb[0].mxu0 %v514
  %v2124 = vpop.f32.mrb[0].mxu0
  %v2125 = vadd.f32 %v294, %v2124
  %v2126 = vpop.f32.mrb[0].mxu0
  %v2127 = vadd.f32 %v298, %v2126
  %v2128 = vpop.f32.mrb[0].mxu0
  %v2129 = vadd.f32 %v294, %v2128
  %v2130 = vpop.f32.mrb[0].mxu0
  %v2131 = vadd.f32 %v298, %v2130
  %2132 = vmatprep.mubr.bf16.mxu0 %v522
  %2133 = vmatmul.mubr.bf16.gmra.mrb[0].mxu0 %v521
  %v2134 = vpop.f32.mrb[0].mxu0
  %v2135 = vadd.f32 %v294, %v2134
  %v2136 = vpop.f32.mrb[0].mxu0
  %v2137 = vadd.f32 %v298, %v2136
  %v2138 = vpop.f32.mrb[0].mxu0
  %v2139 = vadd.f32 %v294, %v2138
  %v2140 = vpop.f32.mrb[0].mxu0
  %v2141 = vadd.f32 %v298, %v2140
  %2142 = vmatprep.mubr.bf16.mxu0 %v529
  %2143 = vmatmul.mubr.bf16.gmra.mrb[0].mxu0 %v528
  %v2144 = vpop.f32.mrb[0].mxu0
  %v2145 = vadd.f32 %v294, %v2144
  %v2146 = vpop.f32.mrb[0].mxu0
  %v2147 = vadd.f32 %v298, %v2146
  %v2148 = vpop.f32.mrb[0].mxu0
  %v2149 = vadd.f32 %v294, %v2148
  %v2150 = vpop.f32.mrb[0].mxu0
  %v2151 = vadd.f32 %v298, %v2150
  %2152 = vdwg.mxu0
  %2153 = vmatprep.subr.bf16.mxu0 %v1238
  %2154 = vmatpush1.bf16.msra.mxu0 %v1237
  %2155 = vmatprep.subr.bf16.mxu0 %v1242
  %2156 = vmatpush1.bf16.msra.mxu0 %v1241
  %2157 = vmatprep.subr.bf16.mxu0 %v1246
  %2158 = vmatpush1.bf16.msra.mxu0 %v1245
  %2159 = vmatprep.subr.bf16.mxu0 %v1250
  %2160 = vmatpush1.bf16.msra.mxu0 %v1249
  %2161 = vmatprep.subr.bf16.mxu0 %v1254
  %2162 = vmatpush1.bf16.msra.mxu0 %v1253
  %2163 = vmatprep.subr.bf16.mxu0 %v1258
  %2164 = vmatpush1.bf16.msra.mxu0 %v1257
  %2165 = vmatprep.subr.bf16.mxu0 %v1262
  %2166 = vmatpush1.bf16.msra.mxu0 %v1261
  %2167 = vmatprep.subr.bf16.mxu0 %v1266
  %2168 = vmatpush1.bf16.msra.mxu0 %v1265
  %2169 = vmatprep.subr.bf16.mxu0 %v1270
  %2170 = vmatpush1.bf16.msra.mxu0 %v1269
  %2171 = vmatprep.subr.bf16.mxu0 %v1274
  %2172 = vmatpush1.bf16.msra.mxu0 %v1273
  %2173 = vmatprep.subr.bf16.mxu0 %v1278
  %2174 = vmatpush1.bf16.msra.mxu0 %v1277
  %2175 = vmatprep.subr.bf16.mxu0 %v1282
  %2176 = vmatpush1.bf16.msra.mxu0 %v1281
  %2177 = vmatprep.subr.bf16.mxu0 %v1286
  %2178 = vmatpush1.bf16.msra.mxu0 %v1285
  %2179 = vmatprep.subr.bf16.mxu0 %v1290
  %2180 = vmatpush1.bf16.msra.mxu0 %v1289
  %2181 = vmatprep.subr.bf16.mxu0 %v1294
  %2182 = vmatpush1.bf16.msra.mxu0 %v1293
  %2183 = vmatprep.subr.bf16.mxu0 %v1298
  %2184 = vmatpush1.bf16.msra.mxu0 %v1297
  %2185 = vmatprep.mubr.bf16.mxu0 %v482
  %2186 = vmatmul.mubr.bf16.gmra.mrb[0].mxu0 %v481
  %v2187 = vpop.f32.mrb[0].mxu0
  %v2188 = vadd.f32 %v2075, %v2187
  %v2189 = vpop.f32.mrb[0].mxu0
  %v2190 = vadd.f32 %v2077, %v2189
  %v2191 = vpop.f32.mrb[0].mxu0
  %v2192 = vadd.f32 %v2079, %v2191
  %v2193 = vpop.f32.mrb[0].mxu0
  %v2194 = vadd.f32 %v2081, %v2193
  %2195 = vmatprep.mubr.bf16.mxu0 %v489
  %2196 = vmatmul.mubr.bf16.gmra.mrb[0].mxu0 %v488
  %v2197 = vpop.f32.mrb[0].mxu0
  %v2198 = vadd.f32 %v2085, %v2197
  %v2199 = vpop.f32.mrb[0].mxu0
  %v2200 = vadd.f32 %v2087, %v2199
  %v2201 = vpop.f32.mrb[0].mxu0
  %v2202 = vadd.f32 %v2089, %v2201
  %v2203 = vpop.f32.mrb[0].mxu0
  %v2204 = vadd.f32 %v2091, %v2203
  %2205 = vmatprep.mubr.bf16.mxu0 %v496
  %2206 = vmatmul.mubr.bf16.gmra.mrb[0].mxu0 %v495
  %v2207 = vpop.f32.mrb[0].mxu0
  %v2208 = vadd.f32 %v2095, %v2207
  %v2209 = vpop.f32.mrb[0].mxu0
  %v2210 = vadd.f32 %v2097, %v2209
  %v2211 = vpop.f32.mrb[0].mxu0
  %v2212 = vadd.f32 %v2099, %v2211
  %v2213 = vpop.f32.mrb[0].mxu0
  %v2214 = vadd.f32 %v2101, %v2213
  %2215 = vmatprep.mubr.bf16.mxu0 %v503
  %2216 = vmatmul.mubr.bf16.gmra.mrb[0].mxu0 %v502
  %v2217 = vpop.f32.mrb[0].mxu0
  %v2218 = vadd.f32 %v2105, %v2217
  %v2219 = vpop.f32.mrb[0].mxu0
  %v2220 = vadd.f32 %v2107, %v2219
  %v2221 = vpop.f32.mrb[0].mxu0
  %v2222 = vadd.f32 %v2109, %v2221
  %v2223 = vpop.f32.mrb[0].mxu0
  %v2224 = vadd.f32 %v2111, %v2223
  %2225 = vmatprep.mubr.bf16.mxu0 %v510
  %2226 = vmatmul.mubr.bf16.gmra.mrb[0].mxu0 %v509
  %v2227 = vpop.f32.mrb[0].mxu0
  %v2228 = vadd.f32 %v2115, %v2227
  %v2229 = vpop.f32.mrb[0].mxu0
  %v2230 = vadd.f32 %v2117, %v2229
  %v2231 = vpop.f32.mrb[0].mxu0
  %v2232 = vadd.f32 %v2119, %v2231
  %v2233 = vpop.f32.mrb[0].mxu0
  %v2234 = vadd.f32 %v2121, %v2233
  %2235 = vmatprep.mubr.bf16.mxu0 %v517
  %2236 = vmatmul.mubr.bf16.gmra.mrb[0].mxu0 %v516
  %v2237 = vpop.f32.mrb[0].mxu0
  %v2238 = vadd.f32 %v2125, %v2237
  %v2239 = vpop.f32.mrb[0].mxu0
  %v2240 = vadd.f32 %v2127, %v2239
  %v2241 = vpop.f32.mrb[0].mxu0
  %v2242 = vadd.f32 %v2129, %v2241
  %v2243 = vpop.f32.mrb[0].mxu0
  %v2244 = vadd.f32 %v2131, %v2243
  %2245 = vmatprep.mubr.bf16.mxu0 %v524
  %2246 = vmatmul.mubr.bf16.gmra.mrb[0].mxu0 %v523
  %v2247 = vpop.f32.mrb[0].mxu0
  %v2248 = vadd.f32 %v2135, %v2247
  %v2249 = vpop.f32.mrb[0].mxu0
  %v2250 = vadd.f32 %v2137, %v2249
  %v2251 = vpop.f32.mrb[0].mxu0
  %v2252 = vadd.f32 %v2139, %v2251
  %v2253 = vpop.f32.mrb[0].mxu0
  %v2254 = vadd.f32 %v2141, %v2253
  %2255 = vmatprep.mubr.bf16.mxu0 %v531
  %2256 = vmatmul.mubr.bf16.gmra.mrb[0].mxu0 %v530
  %v2257 = vpop.f32.mrb[0].mxu0
  %v2258 = vadd.f32 %v2145, %v2257
  %v2259 = vpop.f32.mrb[0].mxu0
  %v2260 = vadd.f32 %v2147, %v2259
  %v2261 = vpop.f32.mrb[0].mxu0
  %v2262 = vadd.f32 %v2149, %v2261
  %v2263 = vpop.f32.mrb[0].mxu0
  %v2264 = vadd.f32 %v2151, %v2263
  %2265 = vdwg.mxu0
  %2266 = vmatprep.subr.bf16.mxu0 %v1302
  %2267 = vmatpush1.bf16.msra.mxu0 %v1301
  %2268 = vmatprep.subr.bf16.mxu0 %v1306
  %2269 = vmatpush1.bf16.msra.mxu0 %v1305
  %2270 = vmatprep.subr.bf16.mxu0 %v1310
  %2271 = vmatpush1.bf16.msra.mxu0 %v1309
  %2272 = vmatprep.subr.bf16.mxu0 %v1314
  %2273 = vmatpush1.bf16.msra.mxu0 %v1313
  %2274 = vmatprep.subr.bf16.mxu0 %v1318
  %2275 = vmatpush1.bf16.msra.mxu0 %v1317
  %2276 = vmatprep.subr.bf16.mxu0 %v1322
  %2277 = vmatpush1.bf16.msra.mxu0 %v1321
  %2278 = vmatprep.subr.bf16.mxu0 %v1326
  %2279 = vmatpush1.bf16.msra.mxu0 %v1325
  %2280 = vmatprep.subr.bf16.mxu0 %v1330
  %2281 = vmatpush1.bf16.msra.mxu0 %v1329
  %2282 = vmatprep.subr.bf16.mxu0 %v1334
  %2283 = vmatpush1.bf16.msra.mxu0 %v1333
  %2284 = vmatprep.subr.bf16.mxu0 %v1338
  %2285 = vmatpush1.bf16.msra.mxu0 %v1337
  %2286 = vmatprep.subr.bf16.mxu0 %v1342
  %2287 = vmatpush1.bf16.msra.mxu0 %v1341
  %2288 = vmatprep.subr.bf16.mxu0 %v1346
  %2289 = vmatpush1.bf16.msra.mxu0 %v1345
  %2290 = vmatprep.subr.bf16.mxu0 %v1350
  %2291 = vmatpush1.bf16.msra.mxu0 %v1349
  %2292 = vmatprep.subr.bf16.mxu0 %v1354
  %2293 = vmatpush1.bf16.msra.mxu0 %v1353
  %2294 = vmatprep.subr.bf16.mxu0 %v1358
  %2295 = vmatpush1.bf16.msra.mxu0 %v1357
  %2296 = vmatprep.subr.bf16.mxu0 %v1362
  %2297 = vmatpush1.bf16.msra.mxu0 %v1361
  %2298 = vmatprep.mubr.bf16.mxu0 %v484
  %2299 = vmatmul.mubr.bf16.gmra.mrb[0].mxu0 %v483
  %v2300 = vpop.f32.mrb[0].mxu0
  %v2301 = vadd.f32 %v2188, %v2300
  %v2302 = vpop.f32.mrb[0].mxu0
  %v2303 = vadd.f32 %v2190, %v2302
  %v2304 = vpop.f32.mrb[0].mxu0
  %v2305 = vadd.f32 %v2192, %v2304
  %v2306 = vpop.f32.mrb[0].mxu0
  %v2307 = vadd.f32 %v2194, %v2306
  %2308 = vmatprep.mubr.bf16.mxu0 %v491
  %2309 = vmatmul.mubr.bf16.gmra.mrb[0].mxu0 %v490
  %v2310 = vpop.f32.mrb[0].mxu0
  %v2311 = vadd.f32 %v2198, %v2310
  %v2312 = vpop.f32.mrb[0].mxu0
  %v2313 = vadd.f32 %v2200, %v2312
  %v2314 = vpop.f32.mrb[0].mxu0
  %v2315 = vadd.f32 %v2202, %v2314
  %v2316 = vpop.f32.mrb[0].mxu0
  %v2317 = vadd.f32 %v2204, %v2316
  %2318 = vmatprep.mubr.bf16.mxu0 %v498
  %2319 = vmatmul.mubr.bf16.gmra.mrb[0].mxu0 %v497
  %v2320 = vpop.f32.mrb[0].mxu0
  %v2321 = vadd.f32 %v2208, %v2320
  %v2322 = vpop.f32.mrb[0].mxu0
  %v2323 = vadd.f32 %v2210, %v2322
  %v2324 = vpop.f32.mrb[0].mxu0
  %v2325 = vadd.f32 %v2212, %v2324
  %v2326 = vpop.f32.mrb[0].mxu0
  %v2327 = vadd.f32 %v2214, %v2326
  %2328 = vmatprep.mubr.bf16.mxu0 %v505
  %2329 = vmatmul.mubr.bf16.gmra.mrb[0].mxu0 %v504
  %v2330 = vpop.f32.mrb[0].mxu0
  %v2331 = vadd.f32 %v2218, %v2330
  %v2332 = vpop.f32.mrb[0].mxu0
  %v2333 = vadd.f32 %v2220, %v2332
  %v2334 = vpop.f32.mrb[0].mxu0
  %v2335 = vadd.f32 %v2222, %v2334
  %v2336 = vpop.f32.mrb[0].mxu0
  %v2337 = vadd.f32 %v2224, %v2336
  %2338 = vmatprep.mubr.bf16.mxu0 %v512
  %2339 = vmatmul.mubr.bf16.gmra.mrb[0].mxu0 %v511
  %v2340 = vpop.f32.mrb[0].mxu0
  %v2341 = vadd.f32 %v2228, %v2340
  %v2342 = vpop.f32.mrb[0].mxu0
  %v2343 = vadd.f32 %v2230, %v2342
  %v2344 = vpop.f32.mrb[0].mxu0
  %v2345 = vadd.f32 %v2232, %v2344
  %v2346 = vpop.f32.mrb[0].mxu0
  %v2347 = vadd.f32 %v2234, %v2346
  %2348 = vmatprep.mubr.bf16.mxu0 %v519
  %2349 = vmatmul.mubr.bf16.gmra.mrb[0].mxu0 %v518
  %v2350 = vpop.f32.mrb[0].mxu0
  %v2351 = vadd.f32 %v2238, %v2350
  %v2352 = vpop.f32.mrb[0].mxu0
  %v2353 = vadd.f32 %v2240, %v2352
  %v2354 = vpop.f32.mrb[0].mxu0
  %v2355 = vadd.f32 %v2242, %v2354
  %v2356 = vpop.f32.mrb[0].mxu0
  %v2357 = vadd.f32 %v2244, %v2356
  %2358 = vmatprep.mubr.bf16.mxu0 %v526
  %2359 = vmatmul.mubr.bf16.gmra.mrb[0].mxu0 %v525
  %v2360 = vpop.f32.mrb[0].mxu0
  %v2361 = vadd.f32 %v2248, %v2360
  %v2362 = vpop.f32.mrb[0].mxu0
  %v2363 = vadd.f32 %v2250, %v2362
  %v2364 = vpop.f32.mrb[0].mxu0
  %v2365 = vadd.f32 %v2252, %v2364
  %v2366 = vpop.f32.mrb[0].mxu0
  %v2367 = vadd.f32 %v2254, %v2366
  %2368 = vmatprep.mubr.bf16.mxu0 %v533
  %2369 = vmatmul.mubr.bf16.gmra.mrb[0].mxu0 %v532
  %v2370 = vpop.f32.mrb[0].mxu0
  %v2371 = vadd.f32 %v2258, %v2370
  %v2372 = vpop.f32.mrb[0].mxu0
  %v2373 = vadd.f32 %v2260, %v2372
  %v2374 = vpop.f32.mrb[0].mxu0
  %v2375 = vadd.f32 %v2262, %v2374
  %v2376 = vpop.f32.mrb[0].mxu0
  %v2377 = vadd.f32 %v2264, %v2376
  %2378 = vdwg.mxu0
  %2379 = vmatprep.subr.bf16.mxu0 %v1366
  %2380 = vmatpush1.bf16.msra.mxu0 %v1365
  %2381 = vmatprep.subr.bf16.mxu0 0
  %2382 = vmatpush1.bf16.msra.mxu0 0
  %2383 = vmatprep.subr.bf16.mxu0 0
  %2384 = vmatpush1.bf16.msra.mxu0 0
  %2385 = vmatprep.subr.bf16.mxu0 0
  %2386 = vmatpush1.bf16.msra.mxu0 0
  %2387 = vmatprep.subr.bf16.mxu0 0
  %2388 = vmatpush1.bf16.msra.mxu0 0
  %2389 = vmatprep.subr.bf16.mxu0 0
  %2390 = vmatpush1.bf16.msra.mxu0 0
  %2391 = vmatprep.subr.bf16.mxu0 0
  %2392 = vmatpush1.bf16.msra.mxu0 0
  %2393 = vmatprep.subr.bf16.mxu0 0
  %2394 = vmatpush1.bf16.msra.mxu0 0
  %2395 = vmatprep.subr.bf16.mxu0 0
  %2396 = vmatpush1.bf16.msra.mxu0 0
  %2397 = vmatprep.subr.bf16.mxu0 0
  %2398 = vmatpush1.bf16.msra.mxu0 0
  %2399 = vmatprep.subr.bf16.mxu0 0
  %2400 = vmatpush1.bf16.msra.mxu0 0
  %2401 = vmatprep.subr.bf16.mxu0 0
  %2402 = vmatpush1.bf16.msra.mxu0 0
  %2403 = vmatprep.subr.bf16.mxu0 0
  %2404 = vmatpush1.bf16.msra.mxu0 0
  %2405 = vmatprep.subr.bf16.mxu0 0
  %2406 = vmatpush1.bf16.msra.mxu0 0
  %2407 = vmatprep.subr.bf16.mxu0 0
  %2408 = vmatpush1.bf16.msra.mxu0 0
  %2409 = vmatprep.subr.bf16.mxu0 0
  %2410 = vmatpush1.bf16.msra.mxu0 0
  %2411 = vmatprep.mubr.bf16.mxu0 0
  %2412 = vmatmul.mubr.bf16.gmra.mrb[0].mxu0 %v1565
  %v2413 = vpop.f32.mrb[0].mxu0
  %v2414 = vadd.f32 %v2301, %v2413
  %v2415 = vpop.f32.mrb[0].mxu0
  %v2416 = vadd.f32 %v2303, %v2415
  %v2417 = vpop.f32.mrb[0].mxu0
  %v2418 = vadd.f32 %v2305, %v2417
  %v2419 = vpop.f32.mrb[0].mxu0
  %v2420 = vadd.f32 %v2307, %v2419
  %2421 = vmatprep.mubr.bf16.mxu0 0
  %2422 = vmatmul.mubr.bf16.gmra.mrb[0].mxu0 %v1568
  %v2423 = vpop.f32.mrb[0].mxu0
  %v2424 = vadd.f32 %v2311, %v2423
  %v2425 = vpop.f32.mrb[0].mxu0
  %v2426 = vadd.f32 %v2313, %v2425
  %v2427 = vpop.f32.mrb[0].mxu0
  %v2428 = vadd.f32 %v2315, %v2427
  %v2429 = vpop.f32.mrb[0].mxu0
  %v2430 = vadd.f32 %v2317, %v2429
  %2431 = vmatprep.mubr.bf16.mxu0 0
  %2432 = vmatmul.mubr.bf16.gmra.mrb[0].mxu0 %v1571
  %v2433 = vpop.f32.mrb[0].mxu0
  %v2434 = vadd.f32 %v2321, %v2433
  %v2435 = vpop.f32.mrb[0].mxu0
  %v2436 = vadd.f32 %v2323, %v2435
  %v2437 = vpop.f32.mrb[0].mxu0
  %v2438 = vadd.f32 %v2325, %v2437
  %v2439 = vpop.f32.mrb[0].mxu0
  %v2440 = vadd.f32 %v2327, %v2439
  %2441 = vmatprep.mubr.bf16.mxu0 0
  %2442 = vmatmul.mubr.bf16.gmra.mrb[0].mxu0 %v1574
  %v2443 = vpop.f32.mrb[0].mxu0
  %v2444 = vadd.f32 %v2331, %v2443
  %v2445 = vpop.f32.mrb[0].mxu0
  %v2446 = vadd.f32 %v2333, %v2445
  %v2447 = vpop.f32.mrb[0].mxu0
  %v2448 = vadd.f32 %v2335, %v2447
  %v2449 = vpop.f32.mrb[0].mxu0
  %v2450 = vadd.f32 %v2337, %v2449
  %2451 = vmatprep.mubr.bf16.mxu0 0
  %2452 = vmatmul.mubr.bf16.gmra.mrb[0].mxu0 %v1577
  %v2453 = vpop.f32.mrb[0].mxu0
  %v2454 = vadd.f32 %v2341, %v2453
  %v2455 = vpop.f32.mrb[0].mxu0
  %v2456 = vadd.f32 %v2343, %v2455
  %v2457 = vpop.f32.mrb[0].mxu0
  %v2458 = vadd.f32 %v2345, %v2457
  %v2459 = vpop.f32.mrb[0].mxu0
  %v2460 = vadd.f32 %v2347, %v2459
  %2461 = vmatprep.mubr.bf16.mxu0 0
  %2462 = vmatmul.mubr.bf16.gmra.mrb[0].mxu0 %v1580
  %v2463 = vpop.f32.mrb[0].mxu0
  %v2464 = vadd.f32 %v2351, %v2463
  %v2465 = vpop.f32.mrb[0].mxu0
  %v2466 = vadd.f32 %v2353, %v2465
  %v2467 = vpop.f32.mrb[0].mxu0
  %v2468 = vadd.f32 %v2355, %v2467
  %v2469 = vpop.f32.mrb[0].mxu0
  %v2470 = vadd.f32 %v2357, %v2469
  %2471 = vmatprep.mubr.bf16.mxu0 0
  %2472 = vmatmul.mubr.bf16.gmra.mrb[0].mxu0 %v1583
  %v2473 = vpop.f32.mrb[0].mxu0
  %v2474 = vadd.f32 %v2361, %v2473
  %v2475 = vpop.f32.mrb[0].mxu0
  %v2476 = vadd.f32 %v2363, %v2475
  %v2477 = vpop.f32.mrb[0].mxu0
  %v2478 = vadd.f32 %v2365, %v2477
  %v2479 = vpop.f32.mrb[0].mxu0
  %v2480 = vadd.f32 %v2367, %v2479
  %2481 = vmatprep.mubr.bf16.mxu0 0
  %2482 = vmatmul.mubr.bf16.gmra.mrb[0].mxu0 %v1586
  %v2483 = vpop.f32.mrb[0].mxu0
  %v2484 = vadd.f32 %v2371, %v2483
  %v2485 = vpop.f32.mrb[0].mxu0
  %v2486 = vadd.f32 %v2373, %v2485
  %v2487 = vpop.f32.mrb[0].mxu0
  %v2488 = vadd.f32 %v2375, %v2487
  %v2489 = vpop.f32.mrb[0].mxu0
  %v2490 = vadd.f32 %v2377, %v2489
  %2491 = vdwg.mxu0
  %v2492 = vmax.f32 %v1962, 0.0
  %v2493 = vmax.f32 %v1964, 0.0
  %v2494 = vmax.f32 %v2414, 0.0
  %v2495 = vmax.f32 %v2416, 0.0
  %v2496 = vmax.f32 %v1966, 0.0
  %v2497 = vmax.f32 %v1968, 0.0
  %v2498 = vmax.f32 %v2418, 0.0
  %v2499 = vmax.f32 %v2420, 0.0
  %v2500 = vmax.f32 %v1972, 0.0
  %v2501 = vmax.f32 %v1974, 0.0
  %v2502 = vmax.f32 %v2424, 0.0
  %v2503 = vmax.f32 %v2426, 0.0
  %v2504 = vmax.f32 %v1976, 0.0
  %v2505 = vmax.f32 %v1978, 0.0
  %v2506 = vmax.f32 %v2428, 0.0
  %v2507 = vmax.f32 %v2430, 0.0
  %v2508 = vmax.f32 %v1982, 0.0
  %v2509 = vmax.f32 %v1984, 0.0
  %v2510 = vmax.f32 %v2434, 0.0
  %v2511 = vmax.f32 %v2436, 0.0
  %v2512 = vmax.f32 %v1986, 0.0
  %v2513 = vmax.f32 %v1988, 0.0
  %v2514 = vmax.f32 %v2438, 0.0
  %v2515 = vmax.f32 %v2440, 0.0
  %v2516 = vmax.f32 %v1992, 0.0
  %v2517 = vmax.f32 %v1994, 0.0
  %v2518 = vmax.f32 %v2444, 0.0
  %v2519 = vmax.f32 %v2446, 0.0
  %v2520 = vmax.f32 %v1996, 0.0
  %v2521 = vmax.f32 %v1998, 0.0
  %v2522 = vmax.f32 %v2448, 0.0
  %v2523 = vmax.f32 %v2450, 0.0
  %v2524 = vmax.f32 %v2002, 0.0
  %v2525 = vmax.f32 %v2004, 0.0
  %v2526 = vmax.f32 %v2454, 0.0
  %v2527 = vmax.f32 %v2456, 0.0
  %v2528 = vmax.f32 %v2006, 0.0
  %v2529 = vmax.f32 %v2008, 0.0
  %v2530 = vmax.f32 %v2458, 0.0
  %v2531 = vmax.f32 %v2460, 0.0
  %v2532 = vmax.f32 %v2012, 0.0
  %v2533 = vmax.f32 %v2014, 0.0
  %v2534 = vmax.f32 %v2464, 0.0
  %v2535 = vmax.f32 %v2466, 0.0
  %v2536 = vmax.f32 %v2016, 0.0
  %v2537 = vmax.f32 %v2018, 0.0
  %v2538 = vmax.f32 %v2468, 0.0
  %v2539 = vmax.f32 %v2470, 0.0
  %v2540 = vmax.f32 %v2022, 0.0
  %v2541 = vmax.f32 %v2024, 0.0
  %v2542 = vmax.f32 %v2474, 0.0
  %v2543 = vmax.f32 %v2476, 0.0
  %v2544 = vmax.f32 %v2026, 0.0
  %v2545 = vmax.f32 %v2028, 0.0
  %v2546 = vmax.f32 %v2478, 0.0
  %v2547 = vmax.f32 %v2480, 0.0
  %v2548 = vmax.f32 %v2032, 0.0
  %v2549 = vmax.f32 %v2034, 0.0
  %v2550 = vmax.f32 %v2484, 0.0
  %v2551 = vmax.f32 %v2486, 0.0
  %v2552 = vmax.f32 %v2036, 0.0
  %v2553 = vmax.f32 %v2038, 0.0
  %v2554 = vmax.f32 %v2488, 0.0
  %v2555 = vmax.f32 %v2490, 0.0
  %v2556 = vpack.c.bf16 %v2496, %v2492
  %v2557 = vpack.c.bf16 %v2497, %v2493
  %v2558 = vpack.c.bf16 %v2498, %v2494
  %v2559 = vpack.c.bf16 %v2499, %v2495
  %v2560 = vpack.c.bf16 %v2504, %v2500
  %v2561 = vpack.c.bf16 %v2505, %v2501
  %v2562 = vpack.c.bf16 %v2506, %v2502
  %v2563 = vpack.c.bf16 %v2507, %v2503
  %v2564 = vpack.c.bf16 %v2512, %v2508
  %v2565 = vpack.c.bf16 %v2513, %v2509
  %v2566 = vpack.c.bf16 %v2514, %v2510
  %v2567 = vpack.c.bf16 %v2515, %v2511
  %v2568 = vpack.c.bf16 %v2520, %v2516
  %v2569 = vpack.c.bf16 %v2521, %v2517
  %v2570 = vpack.c.bf16 %v2522, %v2518
  %v2571 = vpack.c.bf16 %v2523, %v2519
  %v2572 = vpack.c.bf16 %v2528, %v2524
  %v2573 = vpack.c.bf16 %v2529, %v2525
  %v2574 = vpack.c.bf16 %v2530, %v2526
  %v2575 = vpack.c.bf16 %v2531, %v2527
  %v2576 = vpack.c.bf16 %v2536, %v2532
  %v2577 = vpack.c.bf16 %v2537, %v2533
  %v2578 = vpack.c.bf16 %v2538, %v2534
  %v2579 = vpack.c.bf16 %v2539, %v2535
  %v2580 = vpack.c.bf16 %v2544, %v2540
  %v2581 = vpack.c.bf16 %v2545, %v2541
  %v2582 = vpack.c.bf16 %v2546, %v2542
  %v2583 = vpack.c.bf16 %v2547, %v2543
  %v2584 = vpack.c.bf16 %v2552, %v2548
  %v2585 = vpack.c.bf16 %v2553, %v2549
  %v2586 = vpack.c.bf16 %v2554, %v2550
  %v2587 = vpack.c.bf16 %v2555, %v2551
  %v2588 = vld [vmem:[%s3] sm:$0xf]
  %v2589 = vld [vmem:[%s3 + $0x4] sm:$0xf]
  %v2590 = vld [vmem:[%s3 + $0x8] sm:$0xf]
  %v2591 = vld [vmem:[%s3 + $0xc] sm:$0xf]
  %v2592 = vld [vmem:[%s3 + $0x10] sm:$0xf]
  %v2593 = vld [vmem:[%s3 + $0x14] sm:$0xf]
  %v2594 = vld [vmem:[%s3 + $0x18] sm:$0xf]
  %v2595 = vld [vmem:[%s3 + $0x1c] sm:$0xf]
  %v2596 = vld [vmem:[%s3 + $0x20] sm:$0xf]
  %v2597 = vld [vmem:[%s3 + $0x24] sm:$0xf]
  %v2598 = vld [vmem:[%s3 + $0x28] sm:$0xf]
  %v2599 = vld [vmem:[%s3 + $0x2c] sm:$0xf]
  %v2600 = vld [vmem:[%s3 + $0x30] sm:$0xf]
  %v2601 = vld [vmem:[%s3 + $0x34] sm:$0xf]
  %v2602 = vld [vmem:[%s3 + $0x38] sm:$0xf]
  %v2603 = vld [vmem:[%s3 + $0x3c] sm:$0xf]
  %v2604 = vld [vmem:[%s3 + $0x40] sm:$0xf]
  %v2605 = vld [vmem:[%s3 + $0x44] sm:$0xf]
  %v2606 = vld [vmem:[%s3 + $0x48] sm:$0xf]
  %v2607 = vld [vmem:[%s3 + $0x4c] sm:$0xf]
  %v2608 = vld [vmem:[%s3 + $0x50] sm:$0xf]
  %v2609 = vld [vmem:[%s3 + $0x54] sm:$0xf]
  %v2610 = vld [vmem:[%s3 + $0x58] sm:$0xf]
  %v2611 = vld [vmem:[%s3 + $0x5c] sm:$0xf]
  %v2612 = vld [vmem:[%s3 + $0x60] sm:$0xf]
  %v2613 = vld [vmem:[%s3 + $0x64] sm:$0xf]
  %v2614 = vld [vmem:[%s3 + $0x68] sm:$0xf]
  %v2615 = vld [vmem:[%s3 + $0x6c] sm:$0xf]
  %v2616 = vld [vmem:[%s3 + $0x70] sm:$0xf]
  %v2617 = vld [vmem:[%s3 + $0x74] sm:$0xf]
  %v2618 = vld [vmem:[%s3 + $0x78] sm:$0xf]
  %v2619 = vld [vmem:[%s3 + $0x7c] sm:$0xf]
  %v2620 = vld [vmem:[%s3 + $0x80] sm:$0xf]
  %v2621 = vld [vmem:[%s3 + $0x84] sm:$0xf]
  %v2622 = vld [vmem:[%s3 + $0x88] sm:$0xf]
  %v2623 = vld [vmem:[%s3 + $0x8c] sm:$0xf]
  %v2624 = vld [vmem:[%s3 + $0x90] sm:$0xf]
  %v2625 = vld [vmem:[%s3 + $0x94] sm:$0xf]
  %v2626 = vld [vmem:[%s3 + $0x98] sm:$0xf]
  %v2627 = vld [vmem:[%s3 + $0x9c] sm:$0xf]
  %v2628 = vld [vmem:[%s3 + $0xa0] sm:$0xf]
  %v2629 = vld [vmem:[%s3 + $0xa4] sm:$0xf]
  %v2630 = vld [vmem:[%s3 + $0xa8] sm:$0xf]
  %v2631 = vld [vmem:[%s3 + $0xac] sm:$0xf]
  %v2632 = vld [vmem:[%s3 + $0xb0] sm:$0xf]
  %v2633 = vld [vmem:[%s3 + $0xb4] sm:$0xf]
  %v2634 = vld [vmem:[%s3 + $0xb8] sm:$0xf]
  %v2635 = vld [vmem:[%s3 + $0xbc] sm:$0xf]
  %v2636 = vld [vmem:[%s3 + $0xc0] sm:$0xf]
  %v2637 = vld [vmem:[%s3 + $0xc4] sm:$0xf]
  %v2638 = vld [vmem:[%s3 + $0xc8] sm:$0xf]
  %v2639 = vld [vmem:[%s3 + $0xcc] sm:$0xf]
  %v2640 = vld [vmem:[%s3 + $0xd0] sm:$0xf]
  %v2641 = vld [vmem:[%s3 + $0xd4] sm:$0xf]
  %v2642 = vld [vmem:[%s3 + $0xd8] sm:$0xf]
  %v2643 = vld [vmem:[%s3 + $0xdc] sm:$0xf]
  %v2644 = vld [vmem:[%s3 + $0xe0] sm:$0xf]
  %v2645 = vld [vmem:[%s3 + $0xe4] sm:$0xf]
  %v2646 = vld [vmem:[%s3 + $0xe8] sm:$0xf]
  %v2647 = vld [vmem:[%s3 + $0xec] sm:$0xf]
  %v2648 = vld [vmem:[%s3 + $0xf0] sm:$0xf]
  %v2649 = vld [vmem:[%s3 + $0xf4] sm:$0xf]
  %v2650 = vld [vmem:[%s3 + $0xf8] sm:$0xf]
  %v2651 = vld [vmem:[%s3 + $0xfc] sm:$0xf]
  %v2652 = vld [vmem:[%s4] sm:$0x1]
  %v2654 = vlaneseq
  %v2655 = vshrl.u32 %v2654, 7
  %v2656 = vsub.s32 0, %v2655
  %v2657 = vrot.slane %v2652, %v2656
  %v2723 = vunpack.c.l.b16 %v2588
  %v2724 = vunpack.c.l.b16 %v2589
  %v2725 = vunpack.c.l.b16 %v2590
  %v2726 = vunpack.c.l.b16 %v2591
  %v2727 = vunpack.c.l.b16 %v2592
  %v2728 = vunpack.c.l.b16 %v2593
  %v2729 = vunpack.c.l.b16 %v2594
  %v2730 = vunpack.c.l.b16 %v2595
  %v2731 = vunpack.c.l.b16 %v2596
  %v2732 = vunpack.c.l.b16 %v2597
  %v2733 = vunpack.c.l.b16 %v2598
  %v2734 = vunpack.c.l.b16 %v2599
  %v2735 = vunpack.c.l.b16 %v2600
  %v2736 = vunpack.c.l.b16 %v2601
  %v2737 = vunpack.c.l.b16 %v2602
  %v2738 = vunpack.c.l.b16 %v2603
  %v2739 = vunpack.c.l.b16 %v2604
  %v2740 = vunpack.c.l.b16 %v2605
  %v2741 = vunpack.c.l.b16 %v2606
  %v2742 = vunpack.c.l.b16 %v2607
  %v2743 = vunpack.c.l.b16 %v2608
  %v2744 = vunpack.c.l.b16 %v2609
  %v2745 = vunpack.c.l.b16 %v2610
  %v2746 = vunpack.c.l.b16 %v2611
  %v2747 = vunpack.c.l.b16 %v2612
  %v2748 = vunpack.c.l.b16 %v2613
  %v2749 = vunpack.c.l.b16 %v2614
  %v2750 = vunpack.c.l.b16 %v2615
  %v2751 = vunpack.c.l.b16 %v2616
  %v2752 = vunpack.c.l.b16 %v2617
  %v2753 = vunpack.c.l.b16 %v2618
  %v2754 = vunpack.c.l.b16 %v2619
  %v2755 = vunpack.c.l.b16 %v2620
  %v2756 = vunpack.c.l.b16 %v2621
  %v2757 = vunpack.c.l.b16 %v2622
  %v2758 = vunpack.c.l.b16 %v2623
  %v2759 = vunpack.c.l.b16 %v2624
  %v2760 = vunpack.c.l.b16 %v2625
  %v2761 = vunpack.c.l.b16 %v2626
  %v2762 = vunpack.c.l.b16 %v2627
  %v2763 = vunpack.c.l.b16 %v2628
  %v2764 = vunpack.c.l.b16 %v2629
  %v2765 = vunpack.c.l.b16 %v2630
  %v2766 = vunpack.c.l.b16 %v2631
  %v2767 = vunpack.c.l.b16 %v2632
  %v2768 = vunpack.c.l.b16 %v2633
  %v2769 = vunpack.c.l.b16 %v2634
  %v2770 = vunpack.c.l.b16 %v2635
  %v2771 = vunpack.c.l.b16 %v2636
  %v2772 = vunpack.c.l.b16 %v2637
  %v2773 = vunpack.c.l.b16 %v2638
  %v2774 = vunpack.c.l.b16 %v2639
  %v2775 = vunpack.c.l.b16 %v2640
  %v2776 = vunpack.c.l.b16 %v2641
  %v2777 = vunpack.c.l.b16 %v2642
  %v2778 = vunpack.c.l.b16 %v2643
  %v2779 = vunpack.c.l.b16 %v2644
  %v2780 = vunpack.c.l.b16 %v2645
  %v2781 = vunpack.c.l.b16 %v2646
  %v2782 = vunpack.c.l.b16 %v2647
  %v2783 = vunpack.c.l.b16 %v2648
  %v2784 = vunpack.c.l.b16 %v2649
  %v2785 = vunpack.c.l.b16 %v2650
  %v2786 = vunpack.c.l.b16 %v2651
  %v2787 = vpack.c.b16 %v2724, %v2723
  %v2788 = vpack.c.b16 %v2726, %v2725
  %v2789 = vpack.c.b16 %v2728, %v2727
  %v2790 = vpack.c.b16 %v2730, %v2729
  %v2791 = vpack.c.b16 %v2732, %v2731
  %v2792 = vpack.c.b16 %v2734, %v2733
  %v2793 = vpack.c.b16 %v2736, %v2735
  %v2794 = vpack.c.b16 %v2738, %v2737
  %v2795 = vpack.c.b16 %v2740, %v2739
  %v2796 = vpack.c.b16 %v2742, %v2741
  %v2797 = vpack.c.b16 %v2744, %v2743
  %v2798 = vpack.c.b16 %v2746, %v2745
  %v2799 = vpack.c.b16 %v2748, %v2747
  %v2800 = vpack.c.b16 %v2750, %v2749
  %v2801 = vpack.c.b16 %v2752, %v2751
  %v2802 = vpack.c.b16 %v2754, %v2753
  %v2803 = vpack.c.b16 %v2756, %v2755
  %v2804 = vpack.c.b16 %v2758, %v2757
  %v2805 = vpack.c.b16 %v2760, %v2759
  %v2806 = vpack.c.b16 %v2762, %v2761
  %v2807 = vpack.c.b16 %v2764, %v2763
  %v2808 = vpack.c.b16 %v2766, %v2765
  %v2809 = vpack.c.b16 %v2768, %v2767
  %v2810 = vpack.c.b16 %v2770, %v2769
  %v2811 = vpack.c.b16 %v2772, %v2771
  %v2812 = vpack.c.b16 %v2774, %v2773
  %v2813 = vpack.c.b16 %v2776, %v2775
  %v2814 = vpack.c.b16 %v2778, %v2777
  %v2815 = vpack.c.b16 %v2780, %v2779
  %v2816 = vpack.c.b16 %v2782, %v2781
  %v2817 = vpack.c.b16 %v2784, %v2783
  %v2818 = vpack.c.b16 %v2786, %v2785
  %2851 = vmatprep.subr.bf16.mxu0 0
  %2852 = vmatpush1.bf16.msra.mxu0 %v2787
  %2853 = vmatprep.subr.bf16.mxu0 0
  %2854 = vmatpush1.bf16.msra.mxu0 %v2788
  %2855 = vmatprep.subr.bf16.mxu0 0
  %2856 = vmatpush1.bf16.msra.mxu0 %v2789
  %2857 = vmatprep.subr.bf16.mxu0 0
  %2858 = vmatpush1.bf16.msra.mxu0 %v2790
  %2859 = vmatprep.subr.bf16.mxu0 0
  %2860 = vmatpush1.bf16.msra.mxu0 %v2791
  %2861 = vmatprep.subr.bf16.mxu0 0
  %2862 = vmatpush1.bf16.msra.mxu0 %v2792
  %2863 = vmatprep.subr.bf16.mxu0 0
  %2864 = vmatpush1.bf16.msra.mxu0 %v2793
  %2865 = vmatprep.subr.bf16.mxu0 0
  %2866 = vmatpush1.bf16.msra.mxu0 %v2794
  %2867 = vmatprep.subr.bf16.mxu0 0
  %2868 = vmatpush1.bf16.msra.mxu0 %v2795
  %2869 = vmatprep.subr.bf16.mxu0 0
  %2870 = vmatpush1.bf16.msra.mxu0 %v2796
  %2871 = vmatprep.subr.bf16.mxu0 0
  %2872 = vmatpush1.bf16.msra.mxu0 %v2797
  %2873 = vmatprep.subr.bf16.mxu0 0
  %2874 = vmatpush1.bf16.msra.mxu0 %v2798
  %2875 = vmatprep.subr.bf16.mxu0 0
  %2876 = vmatpush1.bf16.msra.mxu0 %v2799
  %2877 = vmatprep.subr.bf16.mxu0 0
  %2878 = vmatpush1.bf16.msra.mxu0 %v2800
  %2879 = vmatprep.subr.bf16.mxu0 0
  %2880 = vmatpush1.bf16.msra.mxu0 %v2801
  %2881 = vmatprep.subr.bf16.mxu0 0
  %2882 = vmatpush1.bf16.msra.mxu0 %v2802
  %2883 = vmatprep.mubr.bf16.mxu0 %v2557
  %2884 = vmatmul.mubr.bf16.gmra.mrb[0].mxu0 %v2556
  %v2885 = vpop.f32.mrb[0].mxu0
  %v2886 = vadd.f32 %v2657, %v2885
  %v2887 = vpop.f32.mrb[0].mxu0
  %v2888 = vpop.f32.mrb[0].mxu0
  %v2889 = vadd.f32 %v2657, %v2888
  %v2890 = vpop.f32.mrb[0].mxu0
  %2891 = vmatprep.mubr.bf16.mxu0 %v2561
  %2892 = vmatmul.mubr.bf16.gmra.mrb[0].mxu0 %v2560
  %v2893 = vpop.f32.mrb[0].mxu0
  %v2894 = vadd.f32 %v2657, %v2893
  %v2895 = vpop.f32.mrb[0].mxu0
  %v2896 = vpop.f32.mrb[0].mxu0
  %v2897 = vadd.f32 %v2657, %v2896
  %v2898 = vpop.f32.mrb[0].mxu0
  %2899 = vmatprep.mubr.bf16.mxu0 %v2565
  %2900 = vmatmul.mubr.bf16.gmra.mrb[0].mxu0 %v2564
  %v2901 = vpop.f32.mrb[0].mxu0
  %v2902 = vadd.f32 %v2657, %v2901
  %v2903 = vpop.f32.mrb[0].mxu0
  %v2904 = vpop.f32.mrb[0].mxu0
  %v2905 = vadd.f32 %v2657, %v2904
  %v2906 = vpop.f32.mrb[0].mxu0
  %2907 = vmatprep.mubr.bf16.mxu0 %v2569
  %2908 = vmatmul.mubr.bf16.gmra.mrb[0].mxu0 %v2568
  %v2909 = vpop.f32.mrb[0].mxu0
  %v2910 = vadd.f32 %v2657, %v2909
  %v2911 = vpop.f32.mrb[0].mxu0
  %v2912 = vpop.f32.mrb[0].mxu0
  %v2913 = vadd.f32 %v2657, %v2912
  %v2914 = vpop.f32.mrb[0].mxu0
  %2915 = vmatprep.mubr.bf16.mxu0 %v2573
  %2916 = vmatmul.mubr.bf16.gmra.mrb[0].mxu0 %v2572
  %v2917 = vpop.f32.mrb[0].mxu0
  %v2918 = vadd.f32 %v2657, %v2917
  %v2919 = vpop.f32.mrb[0].mxu0
  %v2920 = vpop.f32.mrb[0].mxu0
  %v2921 = vadd.f32 %v2657, %v2920
  %v2922 = vpop.f32.mrb[0].mxu0
  %2923 = vmatprep.mubr.bf16.mxu0 %v2577
  %2924 = vmatmul.mubr.bf16.gmra.mrb[0].mxu0 %v2576
  %v2925 = vpop.f32.mrb[0].mxu0
  %v2926 = vadd.f32 %v2657, %v2925
  %v2927 = vpop.f32.mrb[0].mxu0
  %v2928 = vpop.f32.mrb[0].mxu0
  %v2929 = vadd.f32 %v2657, %v2928
  %v2930 = vpop.f32.mrb[0].mxu0
  %2931 = vmatprep.mubr.bf16.mxu0 %v2581
  %2932 = vmatmul.mubr.bf16.gmra.mrb[0].mxu0 %v2580
  %v2933 = vpop.f32.mrb[0].mxu0
  %v2934 = vadd.f32 %v2657, %v2933
  %v2935 = vpop.f32.mrb[0].mxu0
  %v2936 = vpop.f32.mrb[0].mxu0
  %v2937 = vadd.f32 %v2657, %v2936
  %v2938 = vpop.f32.mrb[0].mxu0
  %2939 = vmatprep.mubr.bf16.mxu0 %v2585
  %2940 = vmatmul.mubr.bf16.gmra.mrb[0].mxu0 %v2584
  %v2941 = vpop.f32.mrb[0].mxu0
  %v2942 = vadd.f32 %v2657, %v2941
  %v2943 = vpop.f32.mrb[0].mxu0
  %v2944 = vpop.f32.mrb[0].mxu0
  %v2945 = vadd.f32 %v2657, %v2944
  %v2946 = vpop.f32.mrb[0].mxu0
  %2947 = vdwg.mxu0
  %2948 = vmatprep.subr.bf16.mxu0 0
  %2949 = vmatpush1.bf16.msra.mxu0 %v2803
  %2950 = vmatprep.subr.bf16.mxu0 0
  %2951 = vmatpush1.bf16.msra.mxu0 %v2804
  %2952 = vmatprep.subr.bf16.mxu0 0
  %2953 = vmatpush1.bf16.msra.mxu0 %v2805
  %2954 = vmatprep.subr.bf16.mxu0 0
  %2955 = vmatpush1.bf16.msra.mxu0 %v2806
  %2956 = vmatprep.subr.bf16.mxu0 0
  %2957 = vmatpush1.bf16.msra.mxu0 %v2807
  %2958 = vmatprep.subr.bf16.mxu0 0
  %2959 = vmatpush1.bf16.msra.mxu0 %v2808
  %2960 = vmatprep.subr.bf16.mxu0 0
  %2961 = vmatpush1.bf16.msra.mxu0 %v2809
  %2962 = vmatprep.subr.bf16.mxu0 0
  %2963 = vmatpush1.bf16.msra.mxu0 %v2810
  %2964 = vmatprep.subr.bf16.mxu0 0
  %2965 = vmatpush1.bf16.msra.mxu0 %v2811
  %2966 = vmatprep.subr.bf16.mxu0 0
  %2967 = vmatpush1.bf16.msra.mxu0 %v2812
  %2968 = vmatprep.subr.bf16.mxu0 0
  %2969 = vmatpush1.bf16.msra.mxu0 %v2813
  %2970 = vmatprep.subr.bf16.mxu0 0
  %2971 = vmatpush1.bf16.msra.mxu0 %v2814
  %2972 = vmatprep.subr.bf16.mxu0 0
  %2973 = vmatpush1.bf16.msra.mxu0 %v2815
  %2974 = vmatprep.subr.bf16.mxu0 0
  %2975 = vmatpush1.bf16.msra.mxu0 %v2816
  %2976 = vmatprep.subr.bf16.mxu0 0
  %2977 = vmatpush1.bf16.msra.mxu0 %v2817
  %2978 = vmatprep.subr.bf16.mxu0 0
  %2979 = vmatpush1.bf16.msra.mxu0 %v2818
  %2980 = vmatprep.mubr.bf16.mxu0 %v2559
  %2981 = vmatmul.mubr.bf16.gmra.mrb[0].mxu0 %v2558
  %v2982 = vpop.f32.mrb[0].mxu0
  %v2983 = vadd.f32 %v2886, %v2982
  %v2984 = vpop.f32.mrb[0].mxu0
  %v2985 = vpop.f32.mrb[0].mxu0
  %v2986 = vadd.f32 %v2889, %v2985
  %v2987 = vpop.f32.mrb[0].mxu0
  %2988 = vmatprep.mubr.bf16.mxu0 %v2563
  %2989 = vmatmul.mubr.bf16.gmra.mrb[0].mxu0 %v2562
  %v2990 = vpop.f32.mrb[0].mxu0
  %v2991 = vadd.f32 %v2894, %v2990
  %v2992 = vpop.f32.mrb[0].mxu0
  %v2993 = vpop.f32.mrb[0].mxu0
  %v2994 = vadd.f32 %v2897, %v2993
  %v2995 = vpop.f32.mrb[0].mxu0
  %2996 = vmatprep.mubr.bf16.mxu0 %v2567
  %2997 = vmatmul.mubr.bf16.gmra.mrb[0].mxu0 %v2566
  %v2998 = vpop.f32.mrb[0].mxu0
  %v2999 = vadd.f32 %v2902, %v2998
  %v3000 = vpop.f32.mrb[0].mxu0
  %v3001 = vpop.f32.mrb[0].mxu0
  %v3002 = vadd.f32 %v2905, %v3001
  %v3003 = vpop.f32.mrb[0].mxu0
  %3004 = vmatprep.mubr.bf16.mxu0 %v2571
  %3005 = vmatmul.mubr.bf16.gmra.mrb[0].mxu0 %v2570
  %v3006 = vpop.f32.mrb[0].mxu0
  %v3007 = vadd.f32 %v2910, %v3006
  %v3008 = vpop.f32.mrb[0].mxu0
  %v3009 = vpop.f32.mrb[0].mxu0
  %v3010 = vadd.f32 %v2913, %v3009
  %v3011 = vpop.f32.mrb[0].mxu0
  %3012 = vmatprep.mubr.bf16.mxu0 %v2575
  %3013 = vmatmul.mubr.bf16.gmra.mrb[0].mxu0 %v2574
  %v3014 = vpop.f32.mrb[0].mxu0
  %v3015 = vadd.f32 %v2918, %v3014
  %v3016 = vpop.f32.mrb[0].mxu0
  %v3017 = vpop.f32.mrb[0].mxu0
  %v3018 = vadd.f32 %v2921, %v3017
  %v3019 = vpop.f32.mrb[0].mxu0
  %3020 = vmatprep.mubr.bf16.mxu0 %v2579
  %3021 = vmatmul.mubr.bf16.gmra.mrb[0].mxu0 %v2578
  %v3022 = vpop.f32.mrb[0].mxu0
  %v3023 = vadd.f32 %v2926, %v3022
  %v3024 = vpop.f32.mrb[0].mxu0
  %v3025 = vpop.f32.mrb[0].mxu0
  %v3026 = vadd.f32 %v2929, %v3025
  %v3027 = vpop.f32.mrb[0].mxu0
  %3028 = vmatprep.mubr.bf16.mxu0 %v2583
  %3029 = vmatmul.mubr.bf16.gmra.mrb[0].mxu0 %v2582
  %v3030 = vpop.f32.mrb[0].mxu0
  %v3031 = vadd.f32 %v2934, %v3030
  %v3032 = vpop.f32.mrb[0].mxu0
  %v3033 = vpop.f32.mrb[0].mxu0
  %v3034 = vadd.f32 %v2937, %v3033
  %v3035 = vpop.f32.mrb[0].mxu0
  %3036 = vmatprep.mubr.bf16.mxu0 %v2587
  %3037 = vmatmul.mubr.bf16.gmra.mrb[0].mxu0 %v2586
  %v3038 = vpop.f32.mrb[0].mxu0
  %v3039 = vadd.f32 %v2942, %v3038
  %v3040 = vpop.f32.mrb[0].mxu0
  %v3041 = vpop.f32.mrb[0].mxu0
  %v3042 = vadd.f32 %v2945, %v3041
  %v3043 = vpop.f32.mrb[0].mxu0
  %3044 = vdwg.mxu0
  %3045 = vst [vmem:[%s5] sm:$0xff] %v2983
  %3046 = vst [vmem:[%s5 + $0x8] sm:$0xff] %v2986
  %3047 = vst [vmem:[%s5 + $0x10] sm:$0xff] %v2991
  %3048 = vst [vmem:[%s5 + $0x18] sm:$0xff] %v2994
  %3049 = vst [vmem:[%s5 + $0x20] sm:$0xff] %v2999
  %3050 = vst [vmem:[%s5 + $0x28] sm:$0xff] %v3002
  %3051 = vst [vmem:[%s5 + $0x30] sm:$0xff] %v3007
  %3052 = vst [vmem:[%s5 + $0x38] sm:$0xff] %v3010
  %3053 = vst [vmem:[%s5 + $0x40] sm:$0xff] %v3015
  %3054 = vst [vmem:[%s5 + $0x48] sm:$0xff] %v3018
  %3055 = vst [vmem:[%s5 + $0x50] sm:$0xff] %v3023
  %3056 = vst [vmem:[%s5 + $0x58] sm:$0xff] %v3026
  %3057 = vst [vmem:[%s5 + $0x60] sm:$0xff] %v3031
  %3058 = vst [vmem:[%s5 + $0x68] sm:$0xff] %v3034
  %3059 = vst [vmem:[%s5 + $0x70] sm:$0xff] %v3039
  %3060 = vst [vmem:[%s5 + $0x78] sm:$0xff] %v3042
  // Predicated region
  $region22: #{net_forward.1} parent=0 // pred_check
    _
  $region23: #{net_forward.1} parent=0 // pred_check_branch
    %3062 = sbr.rel (0) target = $region25
  $region24: #{net_forward.1} parent=0 // pred_region
    _
  $region25: #{net_forward.1} parent=0 // pred_fallthru
    _
  // Predicated region
  $region26: #{net_forward.1} parent=0 // pred_check
    _
  $region27: #{net_forward.1} parent=0 // pred_check_branch
    %3064 = sbr.rel (0) target = $region29
  $region28: #{net_forward.1} parent=0 // pred_region
    _
  $region29: #{net_forward.1} parent=0 // pred_fallthru
    _

</llo_original>
